<compile_context>
chip_gen: v7x
topology: tpu7x:2x2x1
jax: 0.10.0
libtpu: 0.0.40
codegen_flags: <defaults>
</compile_context>

<pallas_src>
import functools

import jax
import jax.numpy as jnp
from jax.experimental import pallas as pl
from jax.experimental.pallas import tpu as pltpu


def _round_up(x, m):
    return ((x + m - 1) // m) * m


def _pad_to(a, shape):
    return jnp.pad(a, [(0, s - d) for d, s in zip(a.shape, shape)])


def _choose_tiles(n):
    """Row/contraction tiles for the aggregation kernels.

    512-wide tiles reach ~85% of HBM roofline vs ~29% at 128, so never fall
    back to 128.  N is padded to an even multiple of the row tile so the
    parallel row axis splits evenly across v7x's two TensorCores.
    """
    tm = 512 if n >= 512 else 256
    n_p = _round_up(max(n, 1), 2 * tm)
    tk = tm  # could be grown to 1024+ for very large graphs; 512 is already near roofline
    return n_p, tm, tk


def _compiler_params(semantics, footprint_bytes):
    limit = int(footprint_bytes) + 2 * 1024 * 1024          # tile footprint + headroom
    limit = min(max(limit, 4 * 1024 * 1024), 32 * 1024 * 1024)  # stay inside v7x VMEM
    return pltpu.CompilerParams(dimension_semantics=semantics,
                                vmem_limit_bytes=limit)


def normalized_adj_bf16(edge_index, n, n_p):
    """GCN-normalized adjacency D^-1/2 (A + I) D^-1/2, built directly at padded
    size in bf16 with a single scatter pass (no dense f32 N^2 temporaries).
    For a static graph, compute once and pass to gcn_forward(adj_p=...)."""
    src, dst = edge_index[0], edge_index[1]
    deg = jnp.ones((n,), jnp.float32).at[src].add(1.0)       # row degree incl. self-loop
    dinv = jnp.where(deg > 0, jax.lax.rsqrt(deg), 0.0)
    vals = (dinv[src] * dinv[dst]).astype(jnp.bfloat16)
    adj = jnp.zeros((n_p, n_p), jnp.bfloat16).at[src, dst].add(vals)
    idx = jnp.arange(n)
    # self-loops (the +I term), normalized
    adj = adj.at[idx, idx].add((dinv * dinv).astype(jnp.bfloat16))
    # TODO(synk): for realistically sparse graphs, replace the dense adjacency with
    # block-sparse tiles skipped via PrefetchScalarGridSpec-prefetched tile masks.
    return adj


# ---------------------------------------------------------------------------
# Kernel 1: fused  XW2 = relu(Â @ (X @ W1) + b1) @ W2
#   grid = (row tiles, contraction tiles); f32 VMEM accumulator; W1/W2/b1 are
#   VMEM-resident (constant index_map); H never hits HBM.
# ---------------------------------------------------------------------------
def _layer1_kernel(adj_ref, x_ref, w1_ref, b1_ref, w2_ref, o_ref, acc_ref):
    k = pl.program_id(1)

    @pl.when(k == 0)
    def _():
        acc_ref[...] = jnp.zeros_like(acc_ref)

    # Fused feature transform for this contraction tile (recompute is ~3% extra
    # MXU work; removes the XW1 HBM round-trip and a kernel launch).
    xw = jnp.dot(x_ref[...], w1_ref[...],
                 preferred_element_type=jnp.float32).astype(jnp.bfloat16)
    acc_ref[...] += jnp.dot(adj_ref[...], xw, preferred_element_type=jnp.float32)

    @pl.when(k == pl.num_programs(1) - 1)
    def _():
        h = jnp.maximum(acc_ref[...] + b1_ref[...].astype(jnp.float32), 0.0)
        # TODO(synk): F.dropout(p=0.5) is training-only; eval-mode forward = identity.
        # Fused layer-2 feature transform: emit H @ W2 directly.
        o_ref[...] = jnp.dot(h.astype(jnp.bfloat16), w2_ref[...],
                             preferred_element_type=jnp.float32).astype(o_ref.dtype)


def _layer1(adj, x, w1, b1, w2, *, tm, tk):
    n_p = adj.shape[0]
    f = x.shape[1]
    h = w1.shape[1]
    c = w2.shape[1]
    footprint = (2 * tm * tk * adj.dtype.itemsize          # adj tiles (double-buffered)
                 + 2 * tk * f * x.dtype.itemsize           # x tiles
                 + 2 * (f * h + h * c) * w1.dtype.itemsize  # resident W1, W2
                 + 2 * h * b1.dtype.itemsize               # bias
                 + 2 * tm * c * 2                          # bf16 output tile
                 + tm * h * 4)                             # f32 accumulator
    return pl.pallas_call(
        _layer1_kernel,
        out_shape=jax.ShapeDtypeStruct((n_p, c), jnp.bfloat16),
        grid=(n_p // tm, n_p // tk),
        in_specs=[
            pl.BlockSpec((tm, tk), lambda i, k: (i, k)),   # Â tile
            pl.BlockSpec((tk, f), lambda i, k: (k, 0)),    # X tile (contraction rows)
            pl.BlockSpec((f, h), lambda i, k: (0, 0)),     # W1 (VMEM-resident)
            pl.BlockSpec((1, h), lambda i, k: (0, 0)),     # b1
            pl.BlockSpec((h, c), lambda i, k: (0, 0)),     # W2 (VMEM-resident)
        ],
        out_specs=pl.BlockSpec((tm, c), lambda i, k: (i, 0)),
        scratch_shapes=[pltpu.VMEM((tm, h), jnp.float32)],
        compiler_params=_compiler_params(("parallel", "arbitrary"), footprint),
    )(adj, x, w1, b1, w2)


# ---------------------------------------------------------------------------
# Kernel 2: out = Â @ XW2 + b2
# ---------------------------------------------------------------------------
def _layer2_kernel(adj_ref, xw_ref, b_ref, o_ref, acc_ref):
    k = pl.program_id(1)

    @pl.when(k == 0)
    def _():
        acc_ref[...] = jnp.zeros_like(acc_ref)

    acc_ref[...] += jnp.dot(adj_ref[...], xw_ref[...],
                            preferred_element_type=jnp.float32)

    @pl.when(k == pl.num_programs(1) - 1)
    def _():
        o_ref[...] = (acc_ref[...] + b_ref[...].astype(jnp.float32)).astype(o_ref.dtype)


def _layer2(adj, xw2, b2, *, tm, tk):
    n_p = adj.shape[0]
    c = xw2.shape[1]
    footprint = (2 * tm * tk * adj.dtype.itemsize
                 + 2 * tk * c * xw2.dtype.itemsize
                 + 2 * c * b2.dtype.itemsize
                 + 2 * tm * c * 4
                 + tm * c * 4)
    return pl.pallas_call(
        _layer2_kernel,
        out_shape=jax.ShapeDtypeStruct((n_p, c), jnp.float32),
        grid=(n_p // tm, n_p // tk),
        in_specs=[
            pl.BlockSpec((tm, tk), lambda i, k: (i, k)),
            pl.BlockSpec((tk, c), lambda i, k: (k, 0)),
            pl.BlockSpec((1, c), lambda i, k: (0, 0)),
        ],
        out_specs=pl.BlockSpec((tm, c), lambda i, k: (i, 0)),
        scratch_shapes=[pltpu.VMEM((tm, c), jnp.float32)],
        compiler_params=_compiler_params(("parallel", "arbitrary"), footprint),
    )(adj, xw2, b2)


# ---------------------------------------------------------------------------
# Forward wrapper
# ---------------------------------------------------------------------------
def gcn_forward(x, edge_index, w1, b1, w2, b2, adj_p=None):
    """Eval-mode GCN forward: conv1 -> ReLU -> [dropout = identity] -> conv2."""
    n, f = x.shape
    hidden = w1.shape[1]
    c = w2.shape[1]

    n_p, tm, tk = _choose_tiles(n)
    if adj_p is None:
        # Single bf16 scatter pass; hoist this out of the per-forward path
        # (pass adj_p=) when the graph is static.
        adj_p = normalized_adj_bf16(edge_index, n, n_p)

    # bf16 operands for the MXU streams (f32 accumulation inside the kernels).
    # TODO(synk): on v7x an fp8(e4m3) adjacency (int8 on v5e/v6e) would halve the
    # dominant HBM read; kept bf16 here for accuracy parity with the reference.
    x_p = _pad_to(x.astype(jnp.float32), (n_p, f)).astype(jnp.bfloat16)
    w1_b = w1.astype(jnp.bfloat16)
    w2_b = w2.astype(jnp.bfloat16)
    b1_r = b1.astype(jnp.float32).reshape(1, hidden)
    b2_r = b2.astype(jnp.float32).reshape(1, c)

    # Kernel 1: XW2 = relu(Â @ (X @ W1) + b1) @ W2   (H stays on-chip)
    xw2 = _layer1(adj_p, x_p, w1_b, b1_r, w2_b, tm=tm, tk=tk)
    # Kernel 2: out = Â @ XW2 + b2
    out = _layer2(adj_p, xw2, b2_r, tm=tm, tk=tk)
    return out[:n, :c]


# ---------------------------------------------------------------------------
# References
# ---------------------------------------------------------------------------
def gcn_reference_f32(x, edge_index, w1, b1, w2, b2):
    n = x.shape[0]
    a = jnp.zeros((n, n), jnp.float32).at[edge_index[0], edge_index[1]].add(1.0)
    a = a + jnp.eye(n, dtype=jnp.float32)
    deg = a.sum(axis=1)
    dinv = jnp.where(deg > 0, jax.lax.rsqrt(deg), 0.0)
    adj = dinv[:, None] * a * dinv[None, :]
    h = jnp.maximum(adj @ (x @ w1) + b1, 0.0)
    return adj @ (h @ w2) + b2


def gcn_reference_bf16(x, edge_index, w1, b1, w2, b2):
    """Mirrors the kernels' bf16-operand / f32-accumulate dtype chain."""
    n = x.shape[0]
    dot = functools.partial(jnp.dot, preferred_element_type=jnp.float32)
    adj = normalized_adj_bf16(edge_index, n, n)
    xb = x.astype(jnp.bfloat16)
    xw1 = dot(xb, w1.astype(jnp.bfloat16)).astype(jnp.bfloat16)
    h = jnp.maximum(dot(adj, xw1) + b1, 0.0).astype(jnp.bfloat16)
    xw2 = dot(h, w2.astype(jnp.bfloat16)).astype(jnp.bfloat16)
    return dot(adj, xw2) + b2


if __name__ == "__main__":
    # Small graph; with the new tiling this gives n_p = 512, tm = tk = 256,
    # i.e. a (2, 2) grid that exercises both the parallel row axis and the
    # accumulating contraction axis.
    num_nodes, num_features, hidden_channels, num_classes = 300, 16, 32, 4

    # Deterministic undirected ring graph (both edge directions).
    src = jnp.arange(num_nodes, dtype=jnp.int32)
    dst = (src + 1) % num_nodes
    edge_index = jnp.stack(
        [jnp.concatenate([src, dst]), jnp.concatenate([dst, src])]
    )  # [2, 2*num_nodes]

    key = jax.random.PRNGKey(0)
    k1, k2, k3 = jax.random.split(key, 3)
    x = jax.random.normal(k1, (num_nodes, num_features), jnp.float32)

    # Deterministic glorot-style init; zero biases (GCNConv default).
    w1 = jax.random.normal(k2, (num_features, hidden_channels), jnp.float32) * (
        1.0 / jnp.sqrt(float(num_features))
    )
    b1 = jnp.zeros((hidden_channels,), jnp.float32)
    w2 = jax.random.normal(k3, (hidden_channels, num_classes), jnp.float32) * (
        1.0 / jnp.sqrt(float(hidden_channels))
    )
    b2 = jnp.zeros((num_classes,), jnp.float32)

    out = gcn_forward(x, edge_index, w1, b1, w2, b2)
    jax.block_until_ready(out)
    assert out.shape == (num_nodes, num_classes)

    # Tight check against a reference using the same bf16/f32 dtype chain.
    ref_bf16 = gcn_reference_bf16(x, edge_index, w1, b1, w2, b2)
    assert jnp.allclose(out, ref_bf16, atol=2e-3, rtol=2e-3), float(
        jnp.max(jnp.abs(out - ref_bf16))
    )
    # Looser semantic check against the full-f32 module reference.
    ref_f32 = gcn_reference_f32(x, edge_index, w1, b1, w2, b2)
    assert jnp.allclose(out, ref_f32, atol=1e-1, rtol=1e-1), float(
        jnp.max(jnp.abs(out - ref_f32))
    )

    print("KERNEL_OK")
</pallas_src>

<mosaic_0001>
module attributes {stable_mosaic.version = 11 : i64} {
  func.func @_layer1_kernel(%arg0: i32, %arg1: i32, %arg2: memref<256x256xbf16, #tpu.memory_space<vmem>>, %arg3: memref<256x16xbf16, #tpu.memory_space<vmem>>, %arg4: memref<16x32xbf16, #tpu.memory_space<vmem>>, %arg5: memref<1x32xf32, #tpu.memory_space<vmem>>, %arg6: memref<32x4xbf16, #tpu.memory_space<vmem>>, %arg7: memref<256x4xbf16, #tpu.memory_space<vmem>>, %arg8: memref<256x32xf32, #tpu.memory_space<vmem>>) attributes {dimension_semantics = [#tpu.dimension_semantics<parallel>, #tpu.dimension_semantics<arbitrary>], iteration_bounds = array<i64: 2, 2>, scalar_prefetch = 0 : i64, scratch_operands = 1 : i64, tpu.core_type = #tpu.core_type<tc>, window_params = [{transform_indices = @transform_0, window_bounds = array<i64: 256, 256>}, {transform_indices = @transform_1, window_bounds = array<i64: 256, 16>}, {pipeline_mode = #tpu.pipeline_mode<synchronous>, transform_indices = @transform_2, window_bounds = array<i64: 16, 32>}, {pipeline_mode = #tpu.pipeline_mode<synchronous>, transform_indices = @transform_3, window_bounds = array<i64: 1, 32>}, {pipeline_mode = #tpu.pipeline_mode<synchronous>, transform_indices = @transform_4, window_bounds = array<i64: 32, 4>}, {transform_indices = @transform_5, window_bounds = array<i64: 256, 4>}]} {
    %c0_i32 = arith.constant 0 : i32
    %0 = arith.cmpi eq, %arg1, %c0_i32 : i32
    %1 = arith.extui %0 : i1 to i32
    %c0_i32_0 = arith.constant 0 : i32
    %2 = arith.cmpi ne, %1, %c0_i32_0 : i32
    scf.if %2 {
      %cst_12 = arith.constant 0.000000e+00 : f32
      %15 = vector.broadcast %cst_12 : f32 to vector<256x32xf32>
      %c0_13 = arith.constant 0 : index
      %c0_14 = arith.constant 0 : index
      %16 = vector.load %arg8[%c0_13, %c0_14] : memref<256x32xf32, #tpu.memory_space<vmem>>, vector<256x32xf32>
      tpu.vector_store %arg8[%c0_13, %c0_14], %15 {strides = array<i32>} : memref<256x32xf32, #tpu.memory_space<vmem>>, vector<256x32xf32>,
    } else {
    }
    %c0 = arith.constant 0 : index
    %c0_1 = arith.constant 0 : index
    %3 = vector.load %arg3[%c0, %c0_1] : memref<256x16xbf16, #tpu.memory_space<vmem>>, vector<256x16xbf16>
    %c0_2 = arith.constant 0 : index
    %c0_3 = arith.constant 0 : index
    %4 = vector.load %arg4[%c0_2, %c0_3] : memref<16x32xbf16, #tpu.memory_space<vmem>>, vector<16x32xbf16>
    %cst = arith.constant dense<0.000000e+00> : vector<256x32xf32>
    %5 = tpu.matmul %3, %4, %cst {dimension_numbers = #tpu.dot_dimension_numbers<[1], [0], [0], [1], [0, 0, 1, 1], [], []>} : vector<256x16xbf16>, vector<16x32xbf16>, vector<256x32xf32> -> vector<256x32xf32>
    %6 = arith.truncf %5 : vector<256x32xf32> to vector<256x32xbf16>
    %c0_4 = arith.constant 0 : index
    %c0_5 = arith.constant 0 : index
    %7 = vector.load %arg8[%c0_4, %c0_5] : memref<256x32xf32, #tpu.memory_space<vmem>>, vector<256x32xf32>
    %c0_6 = arith.constant 0 : index
    %c0_7 = arith.constant 0 : index
    %8 = vector.load %arg2[%c0_6, %c0_7] : memref<256x256xbf16, #tpu.memory_space<vmem>>, vector<256x256xbf16>
    %cst_8 = arith.constant dense<0.000000e+00> : vector<256x32xf32>
    %9 = tpu.matmul %8, %6, %cst_8 {dimension_numbers = #tpu.dot_dimension_numbers<[1], [0], [0], [1], [0, 0, 1, 1], [], []>} : vector<256x256xbf16>, vector<256x32xbf16>, vector<256x32xf32> -> vector<256x32xf32>
    %10 = arith.addf %7, %9 : vector<256x32xf32>
    %c0_9 = arith.constant 0 : index
    %c0_10 = arith.constant 0 : index
    %11 = vector.load %arg8[%c0_9, %c0_10] : memref<256x32xf32, #tpu.memory_space<vmem>>, vector<256x32xf32>
    tpu.vector_store %arg8[%c0_9, %c0_10], %10 {strides = array<i32>} : memref<256x32xf32, #tpu.memory_space<vmem>>, vector<256x32xf32>,
    %c1_i32 = arith.constant 1 : i32
    %12 = arith.cmpi eq, %arg1, %c1_i32 : i32
    %13 = arith.extui %12 : i1 to i32
    %c0_i32_11 = arith.constant 0 : i32
    %14 = arith.cmpi ne, %13, %c0_i32_11 : i32
    scf.if %14 {
      %c0_12 = arith.constant 0 : index
      %c0_13 = arith.constant 0 : index
      %15 = vector.load %arg8[%c0_12, %c0_13] : memref<256x32xf32, #tpu.memory_space<vmem>>, vector<256x32xf32>
      %c0_14 = arith.constant 0 : index
      %c0_15 = arith.constant 0 : index
      %16 = vector.load %arg5[%c0_14, %c0_15] : memref<1x32xf32, #tpu.memory_space<vmem>>, vector<1x32xf32>
      %17 = vector.broadcast %16 : vector<1x32xf32> to vector<256x32xf32>
      %18 = arith.addf %15, %17 : vector<256x32xf32>
      %cst_16 = arith.constant 0.000000e+00 : f32
      %19 = vector.broadcast %cst_16 : f32 to vector<256x32xf32>
      %20 = arith.maximumf %18, %19 : vector<256x32xf32>
      %21 = arith.truncf %20 : vector<256x32xf32> to vector<256x32xbf16>
      %c0_17 = arith.constant 0 : index
      %c0_18 = arith.constant 0 : index
      %22 = vector.load %arg6[%c0_17, %c0_18] : memref<32x4xbf16, #tpu.memory_space<vmem>>, vector<32x4xbf16>
      %cst_19 = arith.constant dense<0.000000e+00> : vector<256x4xf32>
      %23 = tpu.matmul %21, %22, %cst_19 {dimension_numbers = #tpu.dot_dimension_numbers<[1], [0], [0], [1], [0, 0, 1, 1], [], []>} : vector<256x32xbf16>, vector<32x4xbf16>, vector<256x4xf32> -> vector<256x4xf32>
      %24 = arith.truncf %23 : vector<256x4xf32> to vector<256x4xbf16>
      %c0_20 = arith.constant 0 : index
      %c0_21 = arith.constant 0 : index
      %25 = vector.load %arg7[%c0_20, %c0_21] : memref<256x4xbf16, #tpu.memory_space<vmem>>, vector<256x4xbf16>
      tpu.vector_store %arg7[%c0_20, %c0_21], %24 {strides = array<i32>} : memref<256x4xbf16, #tpu.memory_space<vmem>>, vector<256x4xbf16>,
    } else {
    }
    return
  }
  func.func @transform_0(%arg0: i32, %arg1: i32) -> (i32, i32) {
    %c0_i32 = arith.constant 0 : i32
    return %arg0, %arg1 : i32, i32
  }
  func.func @transform_1(%arg0: i32, %arg1: i32) -> (i32, i32) {
    %c0_i32 = arith.constant 0 : i32
    %c0_i32_0 = arith.constant 0 : i32
    return %arg1, %c0_i32 : i32, i32
  }
  func.func @transform_2(%arg0: i32, %arg1: i32) -> (i32, i32) {
    %c0_i32 = arith.constant 0 : i32
    %c0_i32_0 = arith.constant 0 : i32
    %c0_i32_1 = arith.constant 0 : i32
    return %c0_i32, %c0_i32_0 : i32, i32
  }
  func.func @transform_3(%arg0: i32, %arg1: i32) -> (i32, i32) {
    %c0_i32 = arith.constant 0 : i32
    %c0_i32_0 = arith.constant 0 : i32
    %c0_i32_1 = arith.constant 0 : i32
    return %c0_i32, %c0_i32_0 : i32, i32
  }
  func.func @transform_4(%arg0: i32, %arg1: i32) -> (i32, i32) {
    %c0_i32 = arith.constant 0 : i32
    %c0_i32_0 = arith.constant 0 : i32
    %c0_i32_1 = arith.constant 0 : i32
    return %c0_i32, %c0_i32_0 : i32, i32
  }
  func.func @transform_5(%arg0: i32, %arg1: i32) -> (i32, i32) {
    %c0_i32 = arith.constant 0 : i32
    %c0_i32_0 = arith.constant 0 : i32
    return %arg0, %c0_i32 : i32, i32
  }
}

</mosaic_0001>

<llo_original>
// kernel: tpu_custom_call.1
$region0: #{tpu_custom_call.1}
  #allocation0 [shape = 'u32[]', space=smem, size = 0x4, offset = 0x4, fixed_abs, tag = 'smem constant byte address 0x4 - core index']
  #allocation1 [shape = 'u32[144,128]{1,0:T(1,128)}', space=vmem, size = 0x12000, scoped, tag = 'internal scratch']
  #allocation2 [shape = 'f32[256,32]{1,0:T(8,128)}', space=vmem, size = 0x20000, scoped, tag = 'scratch operand']
  %s0 = inlined_call_operand.hbm [shape: bf16[512,512], index: 0, kind: input, shape index: {}]
  %s1 = inlined_call_operand.vmem [shape: bf16[512,16], index: 1, kind: input, shape index: {}]
  %s2 = inlined_call_operand.vmem [shape: bf16[16,32], index: 2, kind: input, shape index: {}]
  %s3 = inlined_call_operand.vmem [shape: f32[1,32], index: 3, kind: input, shape index: {}]
  %s4 = inlined_call_operand.vmem [shape: bf16[32,4], index: 4, kind: input, shape index: {}]
  %s5 = inlined_call_operand.vmem [shape: bf16[512,4], index: 5, kind: output, shape index: {}]
  %s6 = sld [smem:[#allocation0]]
  $region65: #{tpu_custom_call.1} parent=0
    _
  %s8 = ssub.s32 1, %s6
  %s9 = scalar_select 0, %s8, %s6
  $region1: #{tpu_custom_call.1} parent=0
    #allocation3 [shape = 'u8[262144]{0}', space=vmem, size = 0x40000, scoped, tag = 'input window, operand 0']
    #allocation4 [shape = 's32[2]{0}', space=sflag, size = 0x8, scoped, tag = 'scoped memory for tpu_custom_call.1']
    %10 = vsyncpa [#allocation4], 0
    %s11 = scalar_lea.sflag [#allocation4], 1
    %12 = vsyncpa %s11, 0
    loop: start=0, step=1, limit=6
    $region2: #{tpu_custom_call.1} parent=1 // loop_pre_header
      _
    $region3: #{tpu_custom_call.1} parent=1 // loop_header
      %s14 = sphi 0, %s18
      %p15 = scmp.ge.s32.totalorder %s14, 6
      %s21 = sphi 0, %s33
      %s22 = sphi 0, %s29
      %s23 = sphi 0, %s21
      %s24 = sphi 0, %s22
      %s25 = sphi 0, %s23
      %s26 = sphi 0, %s24
      %s38 = sphi 0, %s40
      %s41 = sphi 0, %s38
      %s42 = sphi 0, %s41
      %s58 = sphi 0, %s42
      %s64 = sphi 0, %s66
      %s67 = sphi 0, %s64
      %s68 = sphi 0, %s67
      %s84 = sphi 0, %s68
      %s88 = sphi 0, %s88
      %s90 = sphi 0, %s88
      %s91 = sphi 0, %s90
      %s105 = sphi 0, %s91
      %s109 = sphi 0, %s109
      %s111 = sphi 0, %s109
      %s112 = sphi 0, %s111
      %s126 = sphi 0, %s112
      %s130 = sphi 0, %s130
      %s132 = sphi 0, %s130
      %s133 = sphi 0, %s132
      %s147 = sphi 0, %s133
      %s153 = sphi 0, %s155
      %s156 = sphi 0, %s153
      %s157 = sphi 0, %s156
      %s173 = sphi 0, %s157
    $region4: #{tpu_custom_call.1} parent=1 // loop_header_branch
      %17 = sbr.rel (%p15) target = $region8
    $region5: #{tpu_custom_call.1} parent=1 // loop_body
      %s19 = ssub.s32 %s14, 1
      %s20 = ssub.s32 %s14, 2
      %s27 = sadd.s32 1, %s22
      %p28 = scmp.ge.s32.totalorder %s27, 2
      %s29 = scalar_select %p28, 0, %s27
      %s30 = sadd.s32 1, %s21
      %s31 = scalar_select %p28, %s30, %s21
      %p32 = scmp.ge.s32.totalorder %s31, 2
      %s33 = scalar_select %p32, 0, %s31
      %s34 = ssub.s32 %s21, %s33
      %s35 = ssub.s32 %s22, %s29
      %s36 = sor.u32 %s34, %s35
      %p37 = scmp.eq.s32.totalorder %s36, 0
      %s39 = sadd.s32 %s38, 1
      %s40 = scalar_select %p37, %s38, %s39
      %p43 = pneg %p37
      %p44 = scmp.eq.s32.totalorder %s14, 3
      %p45 = por %p43, %p44
      %p46 = scmp.ne.s32.totalorder %s38, %s41
      %p47 = scmp.eq.s32.totalorder %s14, 0
      %p48 = por %p46, %p47
      %p49 = scmp.ne.s32.totalorder %s38, %s41
      %p50 = scmp.eq.s32.totalorder %s19, 3
      %p51 = por %p49, %p50
      %p52 = scmp.ne.s32.totalorder %s41, %s42
      %p53 = scmp.eq.s32.totalorder %s19, 0
      %p54 = por %p52, %p53
      %p55 = scmp.ne.s32.totalorder %s41, %s42
      %p56 = scmp.eq.s32.totalorder %s20, 3
      %p57 = por %p55, %p56
      %p59 = scmp.ne.s32.totalorder %s42, %s58
      %p60 = scmp.eq.s32.totalorder %s20, 0
      %p61 = por %p59, %p60
      %s62 = ssub.s32 %s22, %s29
      %p63 = scmp.eq.s32.totalorder %s62, 0
      %s65 = sadd.s32 %s64, 1
      %s66 = scalar_select %p63, %s64, %s65
      %p69 = pneg %p63
      %p70 = scmp.eq.s32.totalorder %s14, 3
      %p71 = por %p69, %p70
      %p72 = scmp.ne.s32.totalorder %s64, %s67
      %p73 = scmp.eq.s32.totalorder %s14, 0
      %p74 = por %p72, %p73
      %p75 = scmp.ne.s32.totalorder %s64, %s67
      %p76 = scmp.eq.s32.totalorder %s19, 3
      %p77 = por %p75, %p76
      %p78 = scmp.ne.s32.totalorder %s67, %s68
      %p79 = scmp.eq.s32.totalorder %s19, 0
      %p80 = por %p78, %p79
      %p81 = scmp.ne.s32.totalorder %s67, %s68
      %p82 = scmp.eq.s32.totalorder %s20, 3
      %p83 = por %p81, %p82
      %p85 = scmp.ne.s32.totalorder %s68, %s84
      %p86 = scmp.eq.s32.totalorder %s20, 0
      %p87 = por %p85, %p86
      %s89 = sadd.s32 %s88, 1
      %p92 = scmp.eq.s32.totalorder %s14, 3
      %p93 = scmp.ne.s32.totalorder %s88, %s90
      %p94 = scmp.eq.s32.totalorder %s14, 0
      %p95 = por %p93, %p94
      %p96 = scmp.ne.s32.totalorder %s88, %s90
      %p97 = scmp.eq.s32.totalorder %s19, 3
      %p98 = por %p96, %p97
      %p99 = scmp.ne.s32.totalorder %s90, %s91
      %p100 = scmp.eq.s32.totalorder %s19, 0
      %p101 = por %p99, %p100
      %p102 = scmp.ne.s32.totalorder %s90, %s91
      %p103 = scmp.eq.s32.totalorder %s20, 3
      %p104 = por %p102, %p103
      %p106 = scmp.ne.s32.totalorder %s91, %s105
      %p107 = scmp.eq.s32.totalorder %s20, 0
      %p108 = por %p106, %p107
      %s110 = sadd.s32 %s109, 1
      %p113 = scmp.eq.s32.totalorder %s14, 3
      %p114 = scmp.ne.s32.totalorder %s109, %s111
      %p115 = scmp.eq.s32.totalorder %s14, 0
      %p116 = por %p114, %p115
      %p117 = scmp.ne.s32.totalorder %s109, %s111
      %p118 = scmp.eq.s32.totalorder %s19, 3
      %p119 = por %p117, %p118
      %p120 = scmp.ne.s32.totalorder %s111, %s112
      %p121 = scmp.eq.s32.totalorder %s19, 0
      %p122 = por %p120, %p121
      %p123 = scmp.ne.s32.totalorder %s111, %s112
      %p124 = scmp.eq.s32.totalorder %s20, 3
      %p125 = por %p123, %p124
      %p127 = scmp.ne.s32.totalorder %s112, %s126
      %p128 = scmp.eq.s32.totalorder %s20, 0
      %p129 = por %p127, %p128
      %s131 = sadd.s32 %s130, 1
      %p134 = scmp.eq.s32.totalorder %s14, 3
      %p135 = scmp.ne.s32.totalorder %s130, %s132
      %p136 = scmp.eq.s32.totalorder %s14, 0
      %p137 = por %p135, %p136
      %p138 = scmp.ne.s32.totalorder %s130, %s132
      %p139 = scmp.eq.s32.totalorder %s19, 3
      %p140 = por %p138, %p139
      %p141 = scmp.ne.s32.totalorder %s132, %s133
      %p142 = scmp.eq.s32.totalorder %s19, 0
      %p143 = por %p141, %p142
      %p144 = scmp.ne.s32.totalorder %s132, %s133
      %p145 = scmp.eq.s32.totalorder %s20, 3
      %p146 = por %p144, %p145
      %p148 = scmp.ne.s32.totalorder %s133, %s147
      %p149 = scmp.eq.s32.totalorder %s20, 0
      %p150 = por %p148, %p149
      %s151 = ssub.s32 %s21, %s33
      %p152 = scmp.eq.s32.totalorder %s151, 0
      %s154 = sadd.s32 %s153, 1
      %s155 = scalar_select %p152, %s153, %s154
      %p158 = pneg %p152
      %p159 = scmp.eq.s32.totalorder %s14, 3
      %p160 = por %p158, %p159
      %p161 = scmp.ne.s32.totalorder %s153, %s156
      %p162 = scmp.eq.s32.totalorder %s14, 0
      %p163 = por %p161, %p162
      %p164 = scmp.ne.s32.totalorder %s153, %s156
      %p165 = scmp.eq.s32.totalorder %s19, 3
      %p166 = por %p164, %p165
      %p167 = scmp.ne.s32.totalorder %s156, %s157
      %p168 = scmp.eq.s32.totalorder %s19, 0
      %p169 = por %p167, %p168
      %p170 = scmp.ne.s32.totalorder %s156, %s157
      %p171 = scmp.eq.s32.totalorder %s20, 3
      %p172 = por %p170, %p171
      %p174 = scmp.ne.s32.totalorder %s157, %s173
      %p175 = scmp.eq.s32.totalorder %s20, 0
      %p176 = por %p174, %p175
      %p177 = scmp.le.s32.totalorder 1, %s14
      %p178 = scmp.lt.s32.totalorder %s14, 5
      %p179 = pnand %p177, %p178
      %p180 = pneg %p179
      // Predicated region
      $region9: #{tpu_custom_call.1} parent=5 // pred_check
        _
      $region10: #{tpu_custom_call.1} parent=5 // pred_check_branch
        %182 = sbr.rel (%p179) target = $region12
      $region11: #{tpu_custom_call.1} parent=5 // pred_region
        %s183 = ssub.s32 %s14, 1
        // Predicated region
        $region13: #{tpu_custom_call.1} parent=11 // pred_check
          %p184 = pneg %p101
        $region14: #{tpu_custom_call.1} parent=11 // pred_check_branch
          %186 = sbr.rel (%p184) target = $region16
        $region15: #{tpu_custom_call.1} parent=11 // pred_region
          _
        $region16: #{tpu_custom_call.1} parent=11 // pred_fallthru
          _
        // Predicated region
        $region17: #{tpu_custom_call.1} parent=11 // pred_check
          %p187 = pneg %p122
        $region18: #{tpu_custom_call.1} parent=11 // pred_check_branch
          %189 = sbr.rel (%p187) target = $region20
        $region19: #{tpu_custom_call.1} parent=11 // pred_region
          _
        $region20: #{tpu_custom_call.1} parent=11 // pred_fallthru
          _
        // Predicated region
        $region21: #{tpu_custom_call.1} parent=11 // pred_check
          %p190 = pneg %p143
        $region22: #{tpu_custom_call.1} parent=11 // pred_check_branch
          %192 = sbr.rel (%p190) target = $region24
        $region23: #{tpu_custom_call.1} parent=11 // pred_region
          _
        $region24: #{tpu_custom_call.1} parent=11 // pred_fallthru
          _
      $region12: #{tpu_custom_call.1} parent=5 // pred_fallthru
        _
      %p193 = scmp.lt.s32.totalorder %s14, 4
      // Predicated region
      $region25: #{tpu_custom_call.1} parent=5 // pred_check
        %p194 = pneg %p193
      $region26: #{tpu_custom_call.1} parent=5 // pred_check_branch
        %196 = sbr.rel (%p194) target = $region28
      $region27: #{tpu_custom_call.1} parent=5 // pred_region
        // Predicated region
        $region29: #{tpu_custom_call.1} parent=27 // pred_check
          %p197 = pneg %p48
        $region30: #{tpu_custom_call.1} parent=27 // pred_check_branch
          %199 = sbr.rel (%p197) target = $region32
        $region31: #{tpu_custom_call.1} parent=27 // pred_region
          %s200 = sand.u32 %s38, 1
          %s201 = scalar_lea.sflag [#allocation4], %s200
          %s202 = sand.u32 %s38, 1
          %s203 = smul.addr %s202, 256
          %s204 = scalar_lea.vmem [#allocation3], %s203
          %s205 = smul.u32 32, %s21
          %s206 = smul.u32 2, %s22
          %s208 = ssub.s32 4096, 4096
          %209 = vsyncadd %s201, %s208
          %s210 = smul.addr %s205, 4
          %s211 = sadd.s32 %s206, %s210
          %s212 = smul.addr %s211, 64
          %s213 = scalar_lea.hbm %s0, %s212
          %s214 = sshll.u32 %s204, 4
          %s215 = int_to_ptr.vmem [resolvable:$true] %s214
          %220 = dma.hbm_to_vmem [thread:$0]  %s213, 4096, %s215, %s201, 256, 128, 8
        $region32: #{tpu_custom_call.1} parent=27 // pred_fallthru
          _
        // Predicated region
        $region33: #{tpu_custom_call.1} parent=27 // pred_check
          %p221 = pneg %p74
        $region34: #{tpu_custom_call.1} parent=27 // pred_check_branch
          %223 = sbr.rel (%p221) target = $region36
        $region35: #{tpu_custom_call.1} parent=27 // pred_region
          %s224 = smul.u32 32, %s22
          %p225 = scmp.lt.s32.totalorder %s224, 63
          %s226 = scalar_select %p225, %s224, 63
          %s227 = smul.addr %s226, 4
          %s228 = scalar_lea.vmem %s1, %s227
          %s229 = smul.u32 32, %s22
        $region36: #{tpu_custom_call.1} parent=27 // pred_fallthru
          _
      $region28: #{tpu_custom_call.1} parent=5 // pred_fallthru
        _
      %p230 = scmp.le.s32.totalorder 1, %s14
      %p231 = scmp.lt.s32.totalorder %s14, 5
      %p232 = pnand %p230, %p231
      %p233 = pneg %p232
      // Predicated region
      $region37: #{tpu_custom_call.1} parent=5 // pred_check
        _
      $region38: #{tpu_custom_call.1} parent=5 // pred_check_branch
        %235 = sbr.rel (%p232) target = $region40
      $region39: #{tpu_custom_call.1} parent=5 // pred_region
        %s236 = ssub.s32 %s14, 1
        %s237 = sand.u32 %s41, 1
        %s238 = scalar_lea.sflag [#allocation4], %s237
        %s239 = sand.u32 %s41, 1
        %s240 = smul.addr %s239, 256
        %s241 = scalar_lea.vmem [#allocation3], %s240
        // Predicated region
        $region41: #{tpu_custom_call.1} parent=39 // pred_check
          %p242 = pneg %p54
        $region42: #{tpu_custom_call.1} parent=39 // pred_check_branch
          %244 = sbr.rel (%p242) target = $region44
        $region43: #{tpu_custom_call.1} parent=39 // pred_region
          %245 = dma.done %s238, 4096
        $region44: #{tpu_custom_call.1} parent=39 // pred_fallthru
          _
        %s246 = sand.u32 %s41, 1
        %s247 = scalar_lea.sflag [#allocation4], %s246
        %s248 = sand.u32 %s41, 1
        %s249 = smul.addr %s248, 256
        %s250 = scalar_lea.vmem [#allocation3], %s249
        %p251 = pneg %p54
        %p252 = pneg %p51
        %s253 = smul.u32 32, %s24
        %p254 = scmp.lt.s32.totalorder %s253, 63
        %s255 = scalar_select %p254, %s253, 63
        %s256 = smul.addr %s255, 4
        %s257 = scalar_lea.vmem %s1, %s256
        %p258 = pneg %p80
        %p259 = pneg %p77
        %p260 = pneg %p101
        %p261 = pneg %p98
        %p262 = pneg %p122
        %p263 = pneg %p119
        %p264 = pneg %p143
        %p265 = pneg %p140
        %p266 = pneg %p169
        %p267 = pneg %p166
        %s268 = smul.u32 32, %s23
        %p269 = scmp.lt.s32.totalorder %s268, 63
        %s270 = scalar_select %p269, %s268, 63
        %s271 = smul.addr %s270, 4
        %s272 = scalar_lea.vmem %s5, %s271
        %s273 = smul.u32 32, %s23
        %s274 = smul.u32 2, %s24
        %s275 = smul.u32 32, %s24
        %p276 = scmp.lt.s32.totalorder %s275, 63
        %s277 = scalar_select %p276, %s275, 63
        %s278 = smul.addr %s277, 4
        %s279 = scalar_lea.vmem %s1, %s278
        %s280 = smul.u32 32, %s24
        %s281 = smul.u32 32, %s23
        %p282 = scmp.lt.s32.totalorder %s281, 63
        %s283 = scalar_select %p282, %s281, 63
        %s284 = smul.addr %s283, 4
        %s285 = scalar_lea.vmem %s5, %s284
        %s286 = smul.u32 32, %s23
        %p288 = scmp.eq.s32.totalorder %s24, 0
        // Predicated region
        $region45: #{tpu_custom_call.1} parent=39 // pred_check
          %p289 = pneg %p288
        $region46: #{tpu_custom_call.1} parent=39 // pred_check_branch
          %291 = sbr.rel (%p289) target = $region48
        $region47: #{tpu_custom_call.1} parent=39 // pred_region
          %vm292 = vcmask 261120
          %293 = vst.msk [vmem:[#allocation2] sm:$0xff] %vm292, 0.0
          %294 = vst.msk [vmem:[#allocation2 + $0x8] sm:$0xff] %vm292, 0.0
          %295 = vst.msk [vmem:[#allocation2 + $0x10] sm:$0xff] %vm292, 0.0
          %296 = vst.msk [vmem:[#allocation2 + $0x18] sm:$0xff] %vm292, 0.0
          %297 = vst.msk [vmem:[#allocation2 + $0x20] sm:$0xff] %vm292, 0.0
          %298 = vst.msk [vmem:[#allocation2 + $0x28] sm:$0xff] %vm292, 0.0
          %299 = vst.msk [vmem:[#allocation2 + $0x30] sm:$0xff] %vm292, 0.0
          %300 = vst.msk [vmem:[#allocation2 + $0x38] sm:$0xff] %vm292, 0.0
          %301 = vst.msk [vmem:[#allocation2 + $0x40] sm:$0xff] %vm292, 0.0
          %302 = vst.msk [vmem:[#allocation2 + $0x48] sm:$0xff] %vm292, 0.0
          %303 = vst.msk [vmem:[#allocation2 + $0x50] sm:$0xff] %vm292, 0.0
          %304 = vst.msk [vmem:[#allocation2 + $0x58] sm:$0xff] %vm292, 0.0
          %305 = vst.msk [vmem:[#allocation2 + $0x60] sm:$0xff] %vm292, 0.0
          %306 = vst.msk [vmem:[#allocation2 + $0x68] sm:$0xff] %vm292, 0.0
          %307 = vst.msk [vmem:[#allocation2 + $0x70] sm:$0xff] %vm292, 0.0
          %308 = vst.msk [vmem:[#allocation2 + $0x78] sm:$0xff] %vm292, 0.0
          %309 = vst.msk [vmem:[#allocation2 + $0x80] sm:$0xff] %vm292, 0.0
          %310 = vst.msk [vmem:[#allocation2 + $0x88] sm:$0xff] %vm292, 0.0
          %311 = vst.msk [vmem:[#allocation2 + $0x90] sm:$0xff] %vm292, 0.0
          %312 = vst.msk [vmem:[#allocation2 + $0x98] sm:$0xff] %vm292, 0.0
          %313 = vst.msk [vmem:[#allocation2 + $0xa0] sm:$0xff] %vm292, 0.0
          %314 = vst.msk [vmem:[#allocation2 + $0xa8] sm:$0xff] %vm292, 0.0
          %315 = vst.msk [vmem:[#allocation2 + $0xb0] sm:$0xff] %vm292, 0.0
          %316 = vst.msk [vmem:[#allocation2 + $0xb8] sm:$0xff] %vm292, 0.0
          %317 = vst.msk [vmem:[#allocation2 + $0xc0] sm:$0xff] %vm292, 0.0
          %318 = vst.msk [vmem:[#allocation2 + $0xc8] sm:$0xff] %vm292, 0.0
          %319 = vst.msk [vmem:[#allocation2 + $0xd0] sm:$0xff] %vm292, 0.0
          %320 = vst.msk [vmem:[#allocation2 + $0xd8] sm:$0xff] %vm292, 0.0
          %321 = vst.msk [vmem:[#allocation2 + $0xe0] sm:$0xff] %vm292, 0.0
          %322 = vst.msk [vmem:[#allocation2 + $0xe8] sm:$0xff] %vm292, 0.0
          %323 = vst.msk [vmem:[#allocation2 + $0xf0] sm:$0xff] %vm292, 0.0
          %324 = vst.msk [vmem:[#allocation2 + $0xf8] sm:$0xff] %vm292, 0.0
        $region48: #{tpu_custom_call.1} parent=39 // pred_fallthru
          _
        %v325 = vld [vmem:[%s279] sm:$0xf]
        %v326 = vld [vmem:[%s279 + $0x4] sm:$0xf]
        %v327 = vld [vmem:[%s279 + $0x8] sm:$0xf]
        %v328 = vld [vmem:[%s279 + $0xc] sm:$0xf]
        %v329 = vld [vmem:[%s279 + $0x10] sm:$0xf]
        %v330 = vld [vmem:[%s279 + $0x14] sm:$0xf]
        %v331 = vld [vmem:[%s279 + $0x18] sm:$0xf]
        %v332 = vld [vmem:[%s279 + $0x1c] sm:$0xf]
        %v333 = vld [vmem:[%s279 + $0x20] sm:$0xf]
        %v334 = vld [vmem:[%s279 + $0x24] sm:$0xf]
        %v335 = vld [vmem:[%s279 + $0x28] sm:$0xf]
        %v336 = vld [vmem:[%s279 + $0x2c] sm:$0xf]
        %v337 = vld [vmem:[%s279 + $0x30] sm:$0xf]
        %v338 = vld [vmem:[%s279 + $0x34] sm:$0xf]
        %v339 = vld [vmem:[%s279 + $0x38] sm:$0xf]
        %v340 = vld [vmem:[%s279 + $0x3c] sm:$0xf]
        %v341 = vld [vmem:[%s279 + $0x40] sm:$0xf]
        %v342 = vld [vmem:[%s279 + $0x44] sm:$0xf]
        %v343 = vld [vmem:[%s279 + $0x48] sm:$0xf]
        %v344 = vld [vmem:[%s279 + $0x4c] sm:$0xf]
        %v345 = vld [vmem:[%s279 + $0x50] sm:$0xf]
        %v346 = vld [vmem:[%s279 + $0x54] sm:$0xf]
        %v347 = vld [vmem:[%s279 + $0x58] sm:$0xf]
        %v348 = vld [vmem:[%s279 + $0x5c] sm:$0xf]
        %v349 = vld [vmem:[%s279 + $0x60] sm:$0xf]
        %v350 = vld [vmem:[%s279 + $0x64] sm:$0xf]
        %v351 = vld [vmem:[%s279 + $0x68] sm:$0xf]
        %v352 = vld [vmem:[%s279 + $0x6c] sm:$0xf]
        %v353 = vld [vmem:[%s279 + $0x70] sm:$0xf]
        %v354 = vld [vmem:[%s279 + $0x74] sm:$0xf]
        %v355 = vld [vmem:[%s279 + $0x78] sm:$0xf]
        %v356 = vld [vmem:[%s279 + $0x7c] sm:$0xf]
        %v357 = vld [vmem:[%s2] sm:$0xf]
        %v358 = vld [vmem:[%s2 + $0x4] sm:$0xf]
        %v391 = vunpack.c.l.b16 %v325
        %v392 = vunpack.c.l.b16 %v326
        %v393 = vunpack.c.l.b16 %v327
        %v394 = vunpack.c.l.b16 %v328
        %v395 = vunpack.c.l.b16 %v329
        %v396 = vunpack.c.l.b16 %v330
        %v397 = vunpack.c.l.b16 %v331
        %v398 = vunpack.c.l.b16 %v332
        %v399 = vunpack.c.l.b16 %v333
        %v400 = vunpack.c.l.b16 %v334
        %v401 = vunpack.c.l.b16 %v335
        %v402 = vunpack.c.l.b16 %v336
        %v403 = vunpack.c.l.b16 %v337
        %v404 = vunpack.c.l.b16 %v338
        %v405 = vunpack.c.l.b16 %v339
        %v406 = vunpack.c.l.b16 %v340
        %v407 = vunpack.c.l.b16 %v341
        %v408 = vunpack.c.l.b16 %v342
        %v409 = vunpack.c.l.b16 %v343
        %v410 = vunpack.c.l.b16 %v344
        %v411 = vunpack.c.l.b16 %v345
        %v412 = vunpack.c.l.b16 %v346
        %v413 = vunpack.c.l.b16 %v347
        %v414 = vunpack.c.l.b16 %v348
        %v415 = vunpack.c.l.b16 %v349
        %v416 = vunpack.c.l.b16 %v350
        %v417 = vunpack.c.l.b16 %v351
        %v418 = vunpack.c.l.b16 %v352
        %v419 = vunpack.c.l.b16 %v353
        %v420 = vunpack.c.l.b16 %v354
        %v421 = vunpack.c.l.b16 %v355
        %v422 = vunpack.c.l.b16 %v356
        %v423 = vpack.c.b16 %v392, %v391
        %v424 = vpack.c.b16 %v394, %v393
        %v425 = vpack.c.b16 %v396, %v395
        %v426 = vpack.c.b16 %v398, %v397
        %v427 = vpack.c.b16 %v400, %v399
        %v428 = vpack.c.b16 %v402, %v401
        %v429 = vpack.c.b16 %v404, %v403
        %v430 = vpack.c.b16 %v406, %v405
        %v431 = vpack.c.b16 %v408, %v407
        %v432 = vpack.c.b16 %v410, %v409
        %v433 = vpack.c.b16 %v412, %v411
        %v434 = vpack.c.b16 %v414, %v413
        %v435 = vpack.c.b16 %v416, %v415
        %v436 = vpack.c.b16 %v418, %v417
        %v437 = vpack.c.b16 %v420, %v419
        %v438 = vpack.c.b16 %v422, %v421
        %v441 = vunpack.c.l.b16 %v357
        %v442 = vunpack.c.l.b16 %v358
        %v443 = vpack.c.b16 %v442, %v441
        %vm445 = vcmask 130048
        %v447 = vsel %vm445, %v423, 0
        %v450 = vsel %vm445, %v424, 0
        %v453 = vsel %vm445, %v425, 0
        %v456 = vsel %vm445, %v426, 0
        %v459 = vsel %vm445, %v427, 0
        %v462 = vsel %vm445, %v428, 0
        %v465 = vsel %vm445, %v429, 0
        %v468 = vsel %vm445, %v430, 0
        %v471 = vsel %vm445, %v431, 0
        %v474 = vsel %vm445, %v432, 0
        %v477 = vsel %vm445, %v433, 0
        %v480 = vsel %vm445, %v434, 0
        %v483 = vsel %vm445, %v435, 0
        %v486 = vsel %vm445, %v436, 0
        %v489 = vsel %vm445, %v437, 0
        %v492 = vsel %vm445, %v438, 0
        %494 = vmatprep.subr.bf16.mxu0 0
        %495 = vmatpush1.bf16.msra.mxu0 %v443
        %496 = vmatprep.subr.bf16.mxu0 0
        %497 = vmatpush1.bf16.msra.mxu0 0
        %498 = vmatprep.subr.bf16.mxu0 0
        %499 = vmatpush1.bf16.msra.mxu0 0
        %500 = vmatprep.subr.bf16.mxu0 0
        %501 = vmatpush1.bf16.msra.mxu0 0
        %502 = vmatprep.subr.bf16.mxu0 0
        %503 = vmatpush1.bf16.msra.mxu0 0
        %504 = vmatprep.subr.bf16.mxu0 0
        %505 = vmatpush1.bf16.msra.mxu0 0
        %506 = vmatprep.subr.bf16.mxu0 0
        %507 = vmatpush1.bf16.msra.mxu0 0
        %508 = vmatprep.subr.bf16.mxu0 0
        %509 = vmatpush1.bf16.msra.mxu0 0
        %510 = vmatprep.subr.bf16.mxu0 0
        %511 = vmatpush1.bf16.msra.mxu0 0
        %512 = vmatprep.subr.bf16.mxu0 0
        %513 = vmatpush1.bf16.msra.mxu0 0
        %514 = vmatprep.subr.bf16.mxu0 0
        %515 = vmatpush1.bf16.msra.mxu0 0
        %516 = vmatprep.subr.bf16.mxu0 0
        %517 = vmatpush1.bf16.msra.mxu0 0
        %518 = vmatprep.subr.bf16.mxu0 0
        %519 = vmatpush1.bf16.msra.mxu0 0
        %520 = vmatprep.subr.bf16.mxu0 0
        %521 = vmatpush1.bf16.msra.mxu0 0
        %522 = vmatprep.subr.bf16.mxu0 0
        %523 = vmatpush1.bf16.msra.mxu0 0
        %524 = vmatprep.subr.bf16.mxu0 0
        %525 = vmatpush1.bf16.msra.mxu0 0
        %526 = vmatprep.mubr.bf16.mxu0 0
        %527 = vmatmul.mubr.bf16.gmra.mrb[0].mxu0 %v447
        %v528 = vpop.f32.mrb[0].mxu0
        %v529 = vadd.f32 0.0, %v528
        %v530 = vpop.f32.mrb[0].mxu0
        %v531 = vpop.f32.mrb[0].mxu0
        %v532 = vadd.f32 0.0, %v531
        %v533 = vpop.f32.mrb[0].mxu0
        %534 = vmatprep.mubr.bf16.mxu0 0
        %535 = vmatmul.mubr.bf16.gmra.mrb[0].mxu0 %v450
        %v536 = vpop.f32.mrb[0].mxu0
        %v537 = vadd.f32 0.0, %v536
        %v538 = vpop.f32.mrb[0].mxu0
        %v539 = vpop.f32.mrb[0].mxu0
        %v540 = vadd.f32 0.0, %v539
        %v541 = vpop.f32.mrb[0].mxu0
        %542 = vmatprep.mubr.bf16.mxu0 0
        %543 = vmatmul.mubr.bf16.gmra.mrb[0].mxu0 %v453
        %v544 = vpop.f32.mrb[0].mxu0
        %v545 = vadd.f32 0.0, %v544
        %v546 = vpop.f32.mrb[0].mxu0
        %v547 = vpop.f32.mrb[0].mxu0
        %v548 = vadd.f32 0.0, %v547
        %v549 = vpop.f32.mrb[0].mxu0
        %550 = vmatprep.mubr.bf16.mxu0 0
        %551 = vmatmul.mubr.bf16.gmra.mrb[0].mxu0 %v456
        %v552 = vpop.f32.mrb[0].mxu0
        %v553 = vadd.f32 0.0, %v552
        %v554 = vpop.f32.mrb[0].mxu0
        %v555 = vpop.f32.mrb[0].mxu0
        %v556 = vadd.f32 0.0, %v555
        %v557 = vpop.f32.mrb[0].mxu0
        %558 = vmatprep.mubr.bf16.mxu0 0
        %559 = vmatmul.mubr.bf16.gmra.mrb[0].mxu0 %v459
        %v560 = vpop.f32.mrb[0].mxu0
        %v561 = vadd.f32 0.0, %v560
        %v562 = vpop.f32.mrb[0].mxu0
        %v563 = vpop.f32.mrb[0].mxu0
        %v564 = vadd.f32 0.0, %v563
        %v565 = vpop.f32.mrb[0].mxu0
        %566 = vmatprep.mubr.bf16.mxu0 0
        %567 = vmatmul.mubr.bf16.gmra.mrb[0].mxu0 %v462
        %v568 = vpop.f32.mrb[0].mxu0
        %v569 = vadd.f32 0.0, %v568
        %v570 = vpop.f32.mrb[0].mxu0
        %v571 = vpop.f32.mrb[0].mxu0
        %v572 = vadd.f32 0.0, %v571
        %v573 = vpop.f32.mrb[0].mxu0
        %574 = vmatprep.mubr.bf16.mxu0 0
        %575 = vmatmul.mubr.bf16.gmra.mrb[0].mxu0 %v465
        %v576 = vpop.f32.mrb[0].mxu0
        %v577 = vadd.f32 0.0, %v576
        %v578 = vpop.f32.mrb[0].mxu0
        %v579 = vpop.f32.mrb[0].mxu0
        %v580 = vadd.f32 0.0, %v579
        %v581 = vpop.f32.mrb[0].mxu0
        %582 = vmatprep.mubr.bf16.mxu0 0
        %583 = vmatmul.mubr.bf16.gmra.mrb[0].mxu0 %v468
        %v584 = vpop.f32.mrb[0].mxu0
        %v585 = vadd.f32 0.0, %v584
        %v586 = vpop.f32.mrb[0].mxu0
        %v587 = vpop.f32.mrb[0].mxu0
        %v588 = vadd.f32 0.0, %v587
        %v589 = vpop.f32.mrb[0].mxu0
        %590 = vmatprep.mubr.bf16.mxu0 0
        %591 = vmatmul.mubr.bf16.gmra.mrb[0].mxu0 %v471
        %v592 = vpop.f32.mrb[0].mxu0
        %v593 = vadd.f32 0.0, %v592
        %v594 = vpop.f32.mrb[0].mxu0
        %v595 = vpop.f32.mrb[0].mxu0
        %v596 = vadd.f32 0.0, %v595
        %v597 = vpop.f32.mrb[0].mxu0
        %598 = vmatprep.mubr.bf16.mxu0 0
        %599 = vmatmul.mubr.bf16.gmra.mrb[0].mxu0 %v474
        %v600 = vpop.f32.mrb[0].mxu0
        %v601 = vadd.f32 0.0, %v600
        %v602 = vpop.f32.mrb[0].mxu0
        %v603 = vpop.f32.mrb[0].mxu0
        %v604 = vadd.f32 0.0, %v603
        %v605 = vpop.f32.mrb[0].mxu0
        %606 = vmatprep.mubr.bf16.mxu0 0
        %607 = vmatmul.mubr.bf16.gmra.mrb[0].mxu0 %v477
        %v608 = vpop.f32.mrb[0].mxu0
        %v609 = vadd.f32 0.0, %v608
        %v610 = vpop.f32.mrb[0].mxu0
        %v611 = vpop.f32.mrb[0].mxu0
        %v612 = vadd.f32 0.0, %v611
        %v613 = vpop.f32.mrb[0].mxu0
        %614 = vmatprep.mubr.bf16.mxu0 0
        %615 = vmatmul.mubr.bf16.gmra.mrb[0].mxu0 %v480
        %v616 = vpop.f32.mrb[0].mxu0
        %v617 = vadd.f32 0.0, %v616
        %v618 = vpop.f32.mrb[0].mxu0
        %v619 = vpop.f32.mrb[0].mxu0
        %v620 = vadd.f32 0.0, %v619
        %v621 = vpop.f32.mrb[0].mxu0
        %622 = vmatprep.mubr.bf16.mxu0 0
        %623 = vmatmul.mubr.bf16.gmra.mrb[0].mxu0 %v483
        %v624 = vpop.f32.mrb[0].mxu0
        %v625 = vadd.f32 0.0, %v624
        %v626 = vpop.f32.mrb[0].mxu0
        %v627 = vpop.f32.mrb[0].mxu0
        %v628 = vadd.f32 0.0, %v627
        %v629 = vpop.f32.mrb[0].mxu0
        %630 = vmatprep.mubr.bf16.mxu0 0
        %631 = vmatmul.mubr.bf16.gmra.mrb[0].mxu0 %v486
        %v632 = vpop.f32.mrb[0].mxu0
        %v633 = vadd.f32 0.0, %v632
        %v634 = vpop.f32.mrb[0].mxu0
        %v635 = vpop.f32.mrb[0].mxu0
        %v636 = vadd.f32 0.0, %v635
        %v637 = vpop.f32.mrb[0].mxu0
        %638 = vmatprep.mubr.bf16.mxu0 0
        %639 = vmatmul.mubr.bf16.gmra.mrb[0].mxu0 %v489
        %v640 = vpop.f32.mrb[0].mxu0
        %v641 = vadd.f32 0.0, %v640
        %v642 = vpop.f32.mrb[0].mxu0
        %v643 = vpop.f32.mrb[0].mxu0
        %v644 = vadd.f32 0.0, %v643
        %v645 = vpop.f32.mrb[0].mxu0
        %646 = vmatprep.mubr.bf16.mxu0 0
        %647 = vmatmul.mubr.bf16.gmra.mrb[0].mxu0 %v492
        %v648 = vpop.f32.mrb[0].mxu0
        %v649 = vadd.f32 0.0, %v648
        %v650 = vpop.f32.mrb[0].mxu0
        %v651 = vpop.f32.mrb[0].mxu0
        %v652 = vadd.f32 0.0, %v651
        %v653 = vpop.f32.mrb[0].mxu0
        %654 = vdwg.mxu0
        %v655 = vpack.c.bf16 %v532, %v529
        %v656 = vpack.c.bf16 %v540, %v537
        %v657 = vpack.c.bf16 %v548, %v545
        %v658 = vpack.c.bf16 %v556, %v553
        %v659 = vpack.c.bf16 %v564, %v561
        %v660 = vpack.c.bf16 %v572, %v569
        %v661 = vpack.c.bf16 %v580, %v577
        %v662 = vpack.c.bf16 %v588, %v585
        %v663 = vpack.c.bf16 %v596, %v593
        %v664 = vpack.c.bf16 %v604, %v601
        %v665 = vpack.c.bf16 %v612, %v609
        %v666 = vpack.c.bf16 %v620, %v617
        %v667 = vpack.c.bf16 %v628, %v625
        %v668 = vpack.c.bf16 %v636, %v633
        %v669 = vpack.c.bf16 %v644, %v641
        %v670 = vpack.c.bf16 %v652, %v649
        %v671 = vld [vmem:[#allocation2] sm:$0xff]
        %v672 = vld [vmem:[#allocation2 + $0x8] sm:$0xff]
        %v673 = vld [vmem:[#allocation2 + $0x10] sm:$0xff]
        %v674 = vld [vmem:[#allocation2 + $0x18] sm:$0xff]
        %v675 = vld [vmem:[#allocation2 + $0x20] sm:$0xff]
        %v676 = vld [vmem:[#allocation2 + $0x28] sm:$0xff]
        %v677 = vld [vmem:[#allocation2 + $0x30] sm:$0xff]
        %v678 = vld [vmem:[#allocation2 + $0x38] sm:$0xff]
        %v679 = vld [vmem:[#allocation2 + $0x40] sm:$0xff]
        %v680 = vld [vmem:[#allocation2 + $0x48] sm:$0xff]
        %v681 = vld [vmem:[#allocation2 + $0x50] sm:$0xff]
        %v682 = vld [vmem:[#allocation2 + $0x58] sm:$0xff]
        %v683 = vld [vmem:[#allocation2 + $0x60] sm:$0xff]
        %v684 = vld [vmem:[#allocation2 + $0x68] sm:$0xff]
        %v685 = vld [vmem:[#allocation2 + $0x70] sm:$0xff]
        %v686 = vld [vmem:[#allocation2 + $0x78] sm:$0xff]
        %v687 = vld [vmem:[#allocation2 + $0x80] sm:$0xff]
        %v688 = vld [vmem:[#allocation2 + $0x88] sm:$0xff]
        %v689 = vld [vmem:[#allocation2 + $0x90] sm:$0xff]
        %v690 = vld [vmem:[#allocation2 + $0x98] sm:$0xff]
        %v691 = vld [vmem:[#allocation2 + $0xa0] sm:$0xff]
        %v692 = vld [vmem:[#allocation2 + $0xa8] sm:$0xff]
        %v693 = vld [vmem:[#allocation2 + $0xb0] sm:$0xff]
        %v694 = vld [vmem:[#allocation2 + $0xb8] sm:$0xff]
        %v695 = vld [vmem:[#allocation2 + $0xc0] sm:$0xff]
        %v696 = vld [vmem:[#allocation2 + $0xc8] sm:$0xff]
        %v697 = vld [vmem:[#allocation2 + $0xd0] sm:$0xff]
        %v698 = vld [vmem:[#allocation2 + $0xd8] sm:$0xff]
        %v699 = vld [vmem:[#allocation2 + $0xe0] sm:$0xff]
        %v700 = vld [vmem:[#allocation2 + $0xe8] sm:$0xff]
        %v701 = vld [vmem:[#allocation2 + $0xf0] sm:$0xff]
        %v702 = vld [vmem:[#allocation2 + $0xf8] sm:$0xff]
        %v703 = vld [vmem:[%s241] sm:$0xff]
        %v704 = vld [vmem:[%s241 + $0x8] sm:$0xff]
        %v705 = vld [vmem:[%s241 + $0x10] sm:$0xff]
        %v706 = vld [vmem:[%s241 + $0x18] sm:$0xff]
        %v707 = vld [vmem:[%s241 + $0x20] sm:$0xff]
        %v708 = vld [vmem:[%s241 + $0x28] sm:$0xff]
        %v709 = vld [vmem:[%s241 + $0x30] sm:$0xff]
        %v710 = vld [vmem:[%s241 + $0x38] sm:$0xff]
        %v711 = vld [vmem:[%s241 + $0x40] sm:$0xff]
        %v712 = vld [vmem:[%s241 + $0x48] sm:$0xff]
        %v713 = vld [vmem:[%s241 + $0x50] sm:$0xff]
        %v714 = vld [vmem:[%s241 + $0x58] sm:$0xff]
        %v715 = vld [vmem:[%s241 + $0x60] sm:$0xff]
        %v716 = vld [vmem:[%s241 + $0x68] sm:$0xff]
        %v717 = vld [vmem:[%s241 + $0x70] sm:$0xff]
        %v718 = vld [vmem:[%s241 + $0x78] sm:$0xff]
        %v719 = vld [vmem:[%s241 + $0x80] sm:$0xff]
        %v720 = vld [vmem:[%s241 + $0x88] sm:$0xff]
        %v721 = vld [vmem:[%s241 + $0x90] sm:$0xff]
        %v722 = vld [vmem:[%s241 + $0x98] sm:$0xff]
        %v723 = vld [vmem:[%s241 + $0xa0] sm:$0xff]
        %v724 = vld [vmem:[%s241 + $0xa8] sm:$0xff]
        %v725 = vld [vmem:[%s241 + $0xb0] sm:$0xff]
        %v726 = vld [vmem:[%s241 + $0xb8] sm:$0xff]
        %v727 = vld [vmem:[%s241 + $0xc0] sm:$0xff]
        %v728 = vld [vmem:[%s241 + $0xc8] sm:$0xff]
        %v729 = vld [vmem:[%s241 + $0xd0] sm:$0xff]
        %v730 = vld [vmem:[%s241 + $0xd8] sm:$0xff]
        %v731 = vld [vmem:[%s241 + $0xe0] sm:$0xff]
        %v732 = vld [vmem:[%s241 + $0xe8] sm:$0xff]
        %v733 = vld [vmem:[%s241 + $0xf0] sm:$0xff]
        %v734 = vld [vmem:[%s241 + $0xf8] sm:$0xff]
        %v767 = vunpack.c.l.b16 %v703
        %v768 = vunpack.c.h.b16 %v703
        %v769 = vunpack.c.l.b16 %v704
        %v770 = vunpack.c.h.b16 %v704
        %v771 = vunpack.c.l.b16 %v705
        %v772 = vunpack.c.h.b16 %v705
        %v773 = vunpack.c.l.b16 %v706
        %v774 = vunpack.c.h.b16 %v706
        %v775 = vunpack.c.l.b16 %v707
        %v776 = vunpack.c.h.b16 %v707
        %v777 = vunpack.c.l.b16 %v708
        %v778 = vunpack.c.h.b16 %v708
        %v779 = vunpack.c.l.b16 %v709
        %v780 = vunpack.c.h.b16 %v709
        %v781 = vunpack.c.l.b16 %v710
        %v782 = vunpack.c.h.b16 %v710
        %v783 = vunpack.c.l.b16 %v711
        %v784 = vunpack.c.h.b16 %v711
        %v785 = vunpack.c.l.b16 %v712
        %v786 = vunpack.c.h.b16 %v712
        %v787 = vunpack.c.l.b16 %v713
        %v788 = vunpack.c.h.b16 %v713
        %v789 = vunpack.c.l.b16 %v714
        %v790 = vunpack.c.h.b16 %v714
        %v791 = vunpack.c.l.b16 %v715
        %v792 = vunpack.c.h.b16 %v715
        %v793 = vunpack.c.l.b16 %v716
        %v794 = vunpack.c.h.b16 %v716
        %v795 = vunpack.c.l.b16 %v717
        %v796 = vunpack.c.h.b16 %v717
        %v797 = vunpack.c.l.b16 %v718
        %v798 = vunpack.c.h.b16 %v718
        %v799 = vunpack.c.l.b16 %v719
        %v800 = vunpack.c.h.b16 %v719
        %v801 = vunpack.c.l.b16 %v720
        %v802 = vunpack.c.h.b16 %v720
        %v803 = vunpack.c.l.b16 %v721
        %v804 = vunpack.c.h.b16 %v721
        %v805 = vunpack.c.l.b16 %v722
        %v806 = vunpack.c.h.b16 %v722
        %v807 = vunpack.c.l.b16 %v723
        %v808 = vunpack.c.h.b16 %v723
        %v809 = vunpack.c.l.b16 %v724
        %v810 = vunpack.c.h.b16 %v724
        %v811 = vunpack.c.l.b16 %v725
        %v812 = vunpack.c.h.b16 %v725
        %v813 = vunpack.c.l.b16 %v726
        %v814 = vunpack.c.h.b16 %v726
        %v815 = vunpack.c.l.b16 %v727
        %v816 = vunpack.c.h.b16 %v727
        %v817 = vunpack.c.l.b16 %v728
        %v818 = vunpack.c.h.b16 %v728
        %v819 = vunpack.c.l.b16 %v729
        %v820 = vunpack.c.h.b16 %v729
        %v821 = vunpack.c.l.b16 %v730
        %v822 = vunpack.c.h.b16 %v730
        %v823 = vunpack.c.l.b16 %v731
        %v824 = vunpack.c.h.b16 %v731
        %v825 = vunpack.c.l.b16 %v732
        %v826 = vunpack.c.h.b16 %v732
        %v827 = vunpack.c.l.b16 %v733
        %v828 = vunpack.c.h.b16 %v733
        %v829 = vunpack.c.l.b16 %v734
        %v830 = vunpack.c.h.b16 %v734
        %v831 = vpack.c.b16 %v769, %v767
        %v832 = vpack.c.b16 %v770, %v768
        %v833 = vpack.c.b16 %v773, %v771
        %v834 = vpack.c.b16 %v774, %v772
        %v835 = vpack.c.b16 %v777, %v775
        %v836 = vpack.c.b16 %v778, %v776
        %v837 = vpack.c.b16 %v781, %v779
        %v838 = vpack.c.b16 %v782, %v780
        %v839 = vpack.c.b16 %v785, %v783
        %v840 = vpack.c.b16 %v786, %v784
        %v841 = vpack.c.b16 %v789, %v787
        %v842 = vpack.c.b16 %v790, %v788
        %v843 = vpack.c.b16 %v793, %v791
        %v844 = vpack.c.b16 %v794, %v792
        %v845 = vpack.c.b16 %v797, %v795
        %v846 = vpack.c.b16 %v798, %v796
        %v847 = vpack.c.b16 %v801, %v799
        %v848 = vpack.c.b16 %v802, %v800
        %v849 = vpack.c.b16 %v805, %v803
        %v850 = vpack.c.b16 %v806, %v804
        %v851 = vpack.c.b16 %v809, %v807
        %v852 = vpack.c.b16 %v810, %v808
        %v853 = vpack.c.b16 %v813, %v811
        %v854 = vpack.c.b16 %v814, %v812
        %v855 = vpack.c.b16 %v817, %v815
        %v856 = vpack.c.b16 %v818, %v816
        %v857 = vpack.c.b16 %v821, %v819
        %v858 = vpack.c.b16 %v822, %v820
        %v859 = vpack.c.b16 %v825, %v823
        %v860 = vpack.c.b16 %v826, %v824
        %v861 = vpack.c.b16 %v829, %v827
        %v862 = vpack.c.b16 %v830, %v828
        %895 = vmatprep.subr.bf16.mxu0 0
        %896 = vmatpush1.bf16.msra.mxu0 %v655
        %897 = vmatprep.subr.bf16.mxu0 0
        %898 = vmatpush1.bf16.msra.mxu0 %v656
        %899 = vmatprep.subr.bf16.mxu0 0
        %900 = vmatpush1.bf16.msra.mxu0 %v657
        %901 = vmatprep.subr.bf16.mxu0 0
        %902 = vmatpush1.bf16.msra.mxu0 %v658
        %903 = vmatprep.subr.bf16.mxu0 0
        %904 = vmatpush1.bf16.msra.mxu0 %v659
        %905 = vmatprep.subr.bf16.mxu0 0
        %906 = vmatpush1.bf16.msra.mxu0 %v660
        %907 = vmatprep.subr.bf16.mxu0 0
        %908 = vmatpush1.bf16.msra.mxu0 %v661
        %909 = vmatprep.subr.bf16.mxu0 0
        %910 = vmatpush1.bf16.msra.mxu0 %v662
        %911 = vmatprep.subr.bf16.mxu0 0
        %912 = vmatpush1.bf16.msra.mxu0 %v663
        %913 = vmatprep.subr.bf16.mxu0 0
        %914 = vmatpush1.bf16.msra.mxu0 %v664
        %915 = vmatprep.subr.bf16.mxu0 0
        %916 = vmatpush1.bf16.msra.mxu0 %v665
        %917 = vmatprep.subr.bf16.mxu0 0
        %918 = vmatpush1.bf16.msra.mxu0 %v666
        %919 = vmatprep.subr.bf16.mxu0 0
        %920 = vmatpush1.bf16.msra.mxu0 %v667
        %921 = vmatprep.subr.bf16.mxu0 0
        %922 = vmatpush1.bf16.msra.mxu0 %v668
        %923 = vmatprep.subr.bf16.mxu0 0
        %924 = vmatpush1.bf16.msra.mxu0 %v669
        %925 = vmatprep.subr.bf16.mxu0 0
        %926 = vmatpush1.bf16.msra.mxu0 %v670
        %927 = vmatprep.mubr.bf16.mxu0 %v832
        %928 = vmatmul.mubr.bf16.gmra.mrb[0].mxu0 %v831
        %v929 = vpop.f32.mrb[0].mxu0
        %v930 = vadd.f32 0.0, %v929
        %v931 = vpop.f32.mrb[0].mxu0
        %v932 = vpop.f32.mrb[0].mxu0
        %v933 = vadd.f32 0.0, %v932
        %v934 = vpop.f32.mrb[0].mxu0
        %935 = vmatprep.mubr.bf16.mxu0 %v834
        %936 = vmatmul.mubr.bf16.gmra.mrb[0].mxu0 %v833
        %v937 = vpop.f32.mrb[0].mxu0
        %v938 = vadd.f32 0.0, %v937
        %v939 = vpop.f32.mrb[0].mxu0
        %v940 = vpop.f32.mrb[0].mxu0
        %v941 = vadd.f32 0.0, %v940
        %v942 = vpop.f32.mrb[0].mxu0
        %943 = vmatprep.mubr.bf16.mxu0 %v836
        %944 = vmatmul.mubr.bf16.gmra.mrb[0].mxu0 %v835
        %v945 = vpop.f32.mrb[0].mxu0
        %v946 = vadd.f32 0.0, %v945
        %v947 = vpop.f32.mrb[0].mxu0
        %v948 = vpop.f32.mrb[0].mxu0
        %v949 = vadd.f32 0.0, %v948
        %v950 = vpop.f32.mrb[0].mxu0
        %951 = vmatprep.mubr.bf16.mxu0 %v838
        %952 = vmatmul.mubr.bf16.gmra.mrb[0].mxu0 %v837
        %v953 = vpop.f32.mrb[0].mxu0
        %v954 = vadd.f32 0.0, %v953
        %v955 = vpop.f32.mrb[0].mxu0
        %v956 = vpop.f32.mrb[0].mxu0
        %v957 = vadd.f32 0.0, %v956
        %v958 = vpop.f32.mrb[0].mxu0
        %959 = vmatprep.mubr.bf16.mxu0 %v840
        %960 = vmatmul.mubr.bf16.gmra.mrb[0].mxu0 %v839
        %v961 = vpop.f32.mrb[0].mxu0
        %v962 = vadd.f32 0.0, %v961
        %v963 = vpop.f32.mrb[0].mxu0
        %v964 = vpop.f32.mrb[0].mxu0
        %v965 = vadd.f32 0.0, %v964
        %v966 = vpop.f32.mrb[0].mxu0
        %967 = vmatprep.mubr.bf16.mxu0 %v842
        %968 = vmatmul.mubr.bf16.gmra.mrb[0].mxu0 %v841
        %v969 = vpop.f32.mrb[0].mxu0
        %v970 = vadd.f32 0.0, %v969
        %v971 = vpop.f32.mrb[0].mxu0
        %v972 = vpop.f32.mrb[0].mxu0
        %v973 = vadd.f32 0.0, %v972
        %v974 = vpop.f32.mrb[0].mxu0
        %975 = vmatprep.mubr.bf16.mxu0 %v844
        %976 = vmatmul.mubr.bf16.gmra.mrb[0].mxu0 %v843
        %v977 = vpop.f32.mrb[0].mxu0
        %v978 = vadd.f32 0.0, %v977
        %v979 = vpop.f32.mrb[0].mxu0
        %v980 = vpop.f32.mrb[0].mxu0
        %v981 = vadd.f32 0.0, %v980
        %v982 = vpop.f32.mrb[0].mxu0
        %983 = vmatprep.mubr.bf16.mxu0 %v846
        %984 = vmatmul.mubr.bf16.gmra.mrb[0].mxu0 %v845
        %v985 = vpop.f32.mrb[0].mxu0
        %v986 = vadd.f32 0.0, %v985
        %v987 = vpop.f32.mrb[0].mxu0
        %v988 = vpop.f32.mrb[0].mxu0
        %v989 = vadd.f32 0.0, %v988
        %v990 = vpop.f32.mrb[0].mxu0
        %991 = vmatprep.mubr.bf16.mxu0 %v848
        %992 = vmatmul.mubr.bf16.gmra.mrb[0].mxu0 %v847
        %v993 = vpop.f32.mrb[0].mxu0
        %v994 = vadd.f32 0.0, %v993
        %v995 = vpop.f32.mrb[0].mxu0
        %v996 = vpop.f32.mrb[0].mxu0
        %v997 = vadd.f32 0.0, %v996
        %v998 = vpop.f32.mrb[0].mxu0
        %999 = vmatprep.mubr.bf16.mxu0 %v850
        %1000 = vmatmul.mubr.bf16.gmra.mrb[0].mxu0 %v849
        %v1001 = vpop.f32.mrb[0].mxu0
        %v1002 = vadd.f32 0.0, %v1001
        %v1003 = vpop.f32.mrb[0].mxu0
        %v1004 = vpop.f32.mrb[0].mxu0
        %v1005 = vadd.f32 0.0, %v1004
        %v1006 = vpop.f32.mrb[0].mxu0
        %1007 = vmatprep.mubr.bf16.mxu0 %v852
        %1008 = vmatmul.mubr.bf16.gmra.mrb[0].mxu0 %v851
        %v1009 = vpop.f32.mrb[0].mxu0
        %v1010 = vadd.f32 0.0, %v1009
        %v1011 = vpop.f32.mrb[0].mxu0
        %v1012 = vpop.f32.mrb[0].mxu0
        %v1013 = vadd.f32 0.0, %v1012
        %v1014 = vpop.f32.mrb[0].mxu0
        %1015 = vmatprep.mubr.bf16.mxu0 %v854
        %1016 = vmatmul.mubr.bf16.gmra.mrb[0].mxu0 %v853
        %v1017 = vpop.f32.mrb[0].mxu0
        %v1018 = vadd.f32 0.0, %v1017
        %v1019 = vpop.f32.mrb[0].mxu0
        %v1020 = vpop.f32.mrb[0].mxu0
        %v1021 = vadd.f32 0.0, %v1020
        %v1022 = vpop.f32.mrb[0].mxu0
        %1023 = vmatprep.mubr.bf16.mxu0 %v856
        %1024 = vmatmul.mubr.bf16.gmra.mrb[0].mxu0 %v855
        %v1025 = vpop.f32.mrb[0].mxu0
        %v1026 = vadd.f32 0.0, %v1025
        %v1027 = vpop.f32.mrb[0].mxu0
        %v1028 = vpop.f32.mrb[0].mxu0
        %v1029 = vadd.f32 0.0, %v1028
        %v1030 = vpop.f32.mrb[0].mxu0
        %1031 = vmatprep.mubr.bf16.mxu0 %v858
        %1032 = vmatmul.mubr.bf16.gmra.mrb[0].mxu0 %v857
        %v1033 = vpop.f32.mrb[0].mxu0
        %v1034 = vadd.f32 0.0, %v1033
        %v1035 = vpop.f32.mrb[0].mxu0
        %v1036 = vpop.f32.mrb[0].mxu0
        %v1037 = vadd.f32 0.0, %v1036
        %v1038 = vpop.f32.mrb[0].mxu0
        %1039 = vmatprep.mubr.bf16.mxu0 %v860
        %1040 = vmatmul.mubr.bf16.gmra.mrb[0].mxu0 %v859
        %v1041 = vpop.f32.mrb[0].mxu0
        %v1042 = vadd.f32 0.0, %v1041
        %v1043 = vpop.f32.mrb[0].mxu0
        %v1044 = vpop.f32.mrb[0].mxu0
        %v1045 = vadd.f32 0.0, %v1044
        %v1046 = vpop.f32.mrb[0].mxu0
        %1047 = vmatprep.mubr.bf16.mxu0 %v862
        %1048 = vmatmul.mubr.bf16.gmra.mrb[0].mxu0 %v861
        %v1049 = vpop.f32.mrb[0].mxu0
        %v1050 = vadd.f32 0.0, %v1049
        %v1051 = vpop.f32.mrb[0].mxu0
        %v1052 = vpop.f32.mrb[0].mxu0
        %v1053 = vadd.f32 0.0, %v1052
        %v1054 = vpop.f32.mrb[0].mxu0
        %1055 = vdwg.mxu0
        %v1056 = vadd.f32 %v671, %v930
        %v1057 = vadd.f32 %v672, %v933
        %v1058 = vadd.f32 %v673, %v938
        %v1059 = vadd.f32 %v674, %v941
        %v1060 = vadd.f32 %v675, %v946
        %v1061 = vadd.f32 %v676, %v949
        %v1062 = vadd.f32 %v677, %v954
        %v1063 = vadd.f32 %v678, %v957
        %v1064 = vadd.f32 %v679, %v962
        %v1065 = vadd.f32 %v680, %v965
        %v1066 = vadd.f32 %v681, %v970
        %v1067 = vadd.f32 %v682, %v973
        %v1068 = vadd.f32 %v683, %v978
        %v1069 = vadd.f32 %v684, %v981
        %v1070 = vadd.f32 %v685, %v986
        %v1071 = vadd.f32 %v686, %v989
        %v1072 = vadd.f32 %v687, %v994
        %v1073 = vadd.f32 %v688, %v997
        %v1074 = vadd.f32 %v689, %v1002
        %v1075 = vadd.f32 %v690, %v1005
        %v1076 = vadd.f32 %v691, %v1010
        %v1077 = vadd.f32 %v692, %v1013
        %v1078 = vadd.f32 %v693, %v1018
        %v1079 = vadd.f32 %v694, %v1021
        %v1080 = vadd.f32 %v695, %v1026
        %v1081 = vadd.f32 %v696, %v1029
        %v1082 = vadd.f32 %v697, %v1034
        %v1083 = vadd.f32 %v698, %v1037
        %v1084 = vadd.f32 %v699, %v1042
        %v1085 = vadd.f32 %v700, %v1045
        %v1086 = vadd.f32 %v701, %v1050
        %v1087 = vadd.f32 %v702, %v1053
        %vm1088 = vcmask 261120
        %1089 = vst.msk [vmem:[#allocation2] sm:$0xff] %vm1088, %v1056
        %1090 = vst.msk [vmem:[#allocation2 + $0x8] sm:$0xff] %vm1088, %v1057
        %1091 = vst.msk [vmem:[#allocation2 + $0x10] sm:$0xff] %vm1088, %v1058
        %1092 = vst.msk [vmem:[#allocation2 + $0x18] sm:$0xff] %vm1088, %v1059
        %1093 = vst.msk [vmem:[#allocation2 + $0x20] sm:$0xff] %vm1088, %v1060
        %1094 = vst.msk [vmem:[#allocation2 + $0x28] sm:$0xff] %vm1088, %v1061
        %1095 = vst.msk [vmem:[#allocation2 + $0x30] sm:$0xff] %vm1088, %v1062
        %1096 = vst.msk [vmem:[#allocation2 + $0x38] sm:$0xff] %vm1088, %v1063
        %1097 = vst.msk [vmem:[#allocation2 + $0x40] sm:$0xff] %vm1088, %v1064
        %1098 = vst.msk [vmem:[#allocation2 + $0x48] sm:$0xff] %vm1088, %v1065
        %1099 = vst.msk [vmem:[#allocation2 + $0x50] sm:$0xff] %vm1088, %v1066
        %1100 = vst.msk [vmem:[#allocation2 + $0x58] sm:$0xff] %vm1088, %v1067
        %1101 = vst.msk [vmem:[#allocation2 + $0x60] sm:$0xff] %vm1088, %v1068
        %1102 = vst.msk [vmem:[#allocation2 + $0x68] sm:$0xff] %vm1088, %v1069
        %1103 = vst.msk [vmem:[#allocation2 + $0x70] sm:$0xff] %vm1088, %v1070
        %1104 = vst.msk [vmem:[#allocation2 + $0x78] sm:$0xff] %vm1088, %v1071
        %1105 = vst.msk [vmem:[#allocation2 + $0x80] sm:$0xff] %vm1088, %v1072
        %1106 = vst.msk [vmem:[#allocation2 + $0x88] sm:$0xff] %vm1088, %v1073
        %1107 = vst.msk [vmem:[#allocation2 + $0x90] sm:$0xff] %vm1088, %v1074
        %1108 = vst.msk [vmem:[#allocation2 + $0x98] sm:$0xff] %vm1088, %v1075
        %1109 = vst.msk [vmem:[#allocation2 + $0xa0] sm:$0xff] %vm1088, %v1076
        %1110 = vst.msk [vmem:[#allocation2 + $0xa8] sm:$0xff] %vm1088, %v1077
        %1111 = vst.msk [vmem:[#allocation2 + $0xb0] sm:$0xff] %vm1088, %v1078
        %1112 = vst.msk [vmem:[#allocation2 + $0xb8] sm:$0xff] %vm1088, %v1079
        %1113 = vst.msk [vmem:[#allocation2 + $0xc0] sm:$0xff] %vm1088, %v1080
        %1114 = vst.msk [vmem:[#allocation2 + $0xc8] sm:$0xff] %vm1088, %v1081
        %1115 = vst.msk [vmem:[#allocation2 + $0xd0] sm:$0xff] %vm1088, %v1082
        %1116 = vst.msk [vmem:[#allocation2 + $0xd8] sm:$0xff] %vm1088, %v1083
        %1117 = vst.msk [vmem:[#allocation2 + $0xe0] sm:$0xff] %vm1088, %v1084
        %1118 = vst.msk [vmem:[#allocation2 + $0xe8] sm:$0xff] %vm1088, %v1085
        %1119 = vst.msk [vmem:[#allocation2 + $0xf0] sm:$0xff] %vm1088, %v1086
        %1120 = vst.msk [vmem:[#allocation2 + $0xf8] sm:$0xff] %vm1088, %v1087
        %p1121 = scmp.eq.s32.totalorder %s24, 1
        // Predicated region
        $region49: #{tpu_custom_call.1} parent=39 // pred_check
          %p1122 = pneg %p1121
        $region50: #{tpu_custom_call.1} parent=39 // pred_check_branch
          %1124 = sbr.rel (%p1122) target = $region52
        $region51: #{tpu_custom_call.1} parent=39 // pred_region
          %v1125 = vld [vmem:[#allocation2] sm:$0xff]
          %v1126 = vld [vmem:[#allocation2 + $0x8] sm:$0xff]
          %v1127 = vld [vmem:[#allocation2 + $0x10] sm:$0xff]
          %v1128 = vld [vmem:[#allocation2 + $0x18] sm:$0xff]
          %v1129 = vld [vmem:[#allocation2 + $0x20] sm:$0xff]
          %v1130 = vld [vmem:[#allocation2 + $0x28] sm:$0xff]
          %v1131 = vld [vmem:[#allocation2 + $0x30] sm:$0xff]
          %v1132 = vld [vmem:[#allocation2 + $0x38] sm:$0xff]
          %v1133 = vld [vmem:[#allocation2 + $0x40] sm:$0xff]
          %v1134 = vld [vmem:[#allocation2 + $0x48] sm:$0xff]
          %v1135 = vld [vmem:[#allocation2 + $0x50] sm:$0xff]
          %v1136 = vld [vmem:[#allocation2 + $0x58] sm:$0xff]
          %v1137 = vld [vmem:[#allocation2 + $0x60] sm:$0xff]
          %v1138 = vld [vmem:[#allocation2 + $0x68] sm:$0xff]
          %v1139 = vld [vmem:[#allocation2 + $0x70] sm:$0xff]
          %v1140 = vld [vmem:[#allocation2 + $0x78] sm:$0xff]
          %v1141 = vld [vmem:[#allocation2 + $0x80] sm:$0xff]
          %v1142 = vld [vmem:[#allocation2 + $0x88] sm:$0xff]
          %v1143 = vld [vmem:[#allocation2 + $0x90] sm:$0xff]
          %v1144 = vld [vmem:[#allocation2 + $0x98] sm:$0xff]
          %v1145 = vld [vmem:[#allocation2 + $0xa0] sm:$0xff]
          %v1146 = vld [vmem:[#allocation2 + $0xa8] sm:$0xff]
          %v1147 = vld [vmem:[#allocation2 + $0xb0] sm:$0xff]
          %v1148 = vld [vmem:[#allocation2 + $0xb8] sm:$0xff]
          %v1149 = vld [vmem:[#allocation2 + $0xc0] sm:$0xff]
          %v1150 = vld [vmem:[#allocation2 + $0xc8] sm:$0xff]
          %v1151 = vld [vmem:[#allocation2 + $0xd0] sm:$0xff]
          %v1152 = vld [vmem:[#allocation2 + $0xd8] sm:$0xff]
          %v1153 = vld [vmem:[#allocation2 + $0xe0] sm:$0xff]
          %v1154 = vld [vmem:[#allocation2 + $0xe8] sm:$0xff]
          %v1155 = vld [vmem:[#allocation2 + $0xf0] sm:$0xff]
          %v1156 = vld [vmem:[#allocation2 + $0xf8] sm:$0xff]
          %v1157 = vld [vmem:[%s3] sm:$0x1]
          %v1159 = vlaneseq
          %v1160 = vshrl.u32 %v1159, 7
          %v1161 = vsub.s32 0, %v1160
          %v1162 = vrot.slane %v1157, %v1161
          %v1164 = vadd.f32 %v1125, %v1162
          %v1165 = vadd.f32 %v1126, %v1162
          %v1166 = vadd.f32 %v1127, %v1162
          %v1167 = vadd.f32 %v1128, %v1162
          %v1168 = vadd.f32 %v1129, %v1162
          %v1169 = vadd.f32 %v1130, %v1162
          %v1170 = vadd.f32 %v1131, %v1162
          %v1171 = vadd.f32 %v1132, %v1162
          %v1172 = vadd.f32 %v1133, %v1162
          %v1173 = vadd.f32 %v1134, %v1162
          %v1174 = vadd.f32 %v1135, %v1162
          %v1175 = vadd.f32 %v1136, %v1162
          %v1176 = vadd.f32 %v1137, %v1162
          %v1177 = vadd.f32 %v1138, %v1162
          %v1178 = vadd.f32 %v1139, %v1162
          %v1179 = vadd.f32 %v1140, %v1162
          %v1180 = vadd.f32 %v1141, %v1162
          %v1181 = vadd.f32 %v1142, %v1162
          %v1182 = vadd.f32 %v1143, %v1162
          %v1183 = vadd.f32 %v1144, %v1162
          %v1184 = vadd.f32 %v1145, %v1162
          %v1185 = vadd.f32 %v1146, %v1162
          %v1186 = vadd.f32 %v1147, %v1162
          %v1187 = vadd.f32 %v1148, %v1162
          %v1188 = vadd.f32 %v1149, %v1162
          %v1189 = vadd.f32 %v1150, %v1162
          %v1190 = vadd.f32 %v1151, %v1162
          %v1191 = vadd.f32 %v1152, %v1162
          %v1192 = vadd.f32 %v1153, %v1162
          %v1193 = vadd.f32 %v1154, %v1162
          %v1194 = vadd.f32 %v1155, %v1162
          %v1195 = vadd.f32 %v1156, %v1162
          %v1196 = vmax.f32 %v1164, 0.0
          %v1197 = vmax.f32 %v1165, 0.0
          %v1198 = vmax.f32 %v1166, 0.0
          %v1199 = vmax.f32 %v1167, 0.0
          %v1200 = vmax.f32 %v1168, 0.0
          %v1201 = vmax.f32 %v1169, 0.0
          %v1202 = vmax.f32 %v1170, 0.0
          %v1203 = vmax.f32 %v1171, 0.0
          %v1204 = vmax.f32 %v1172, 0.0
          %v1205 = vmax.f32 %v1173, 0.0
          %v1206 = vmax.f32 %v1174, 0.0
          %v1207 = vmax.f32 %v1175, 0.0
          %v1208 = vmax.f32 %v1176, 0.0
          %v1209 = vmax.f32 %v1177, 0.0
          %v1210 = vmax.f32 %v1178, 0.0
          %v1211 = vmax.f32 %v1179, 0.0
          %v1212 = vmax.f32 %v1180, 0.0
          %v1213 = vmax.f32 %v1181, 0.0
          %v1214 = vmax.f32 %v1182, 0.0
          %v1215 = vmax.f32 %v1183, 0.0
          %v1216 = vmax.f32 %v1184, 0.0
          %v1217 = vmax.f32 %v1185, 0.0
          %v1218 = vmax.f32 %v1186, 0.0
          %v1219 = vmax.f32 %v1187, 0.0
          %v1220 = vmax.f32 %v1188, 0.0
          %v1221 = vmax.f32 %v1189, 0.0
          %v1222 = vmax.f32 %v1190, 0.0
          %v1223 = vmax.f32 %v1191, 0.0
          %v1224 = vmax.f32 %v1192, 0.0
          %v1225 = vmax.f32 %v1193, 0.0
          %v1226 = vmax.f32 %v1194, 0.0
          %v1227 = vmax.f32 %v1195, 0.0
          %v1228 = vpack.c.bf16 %v1197, %v1196
          %v1229 = vpack.c.bf16 %v1199, %v1198
          %v1230 = vpack.c.bf16 %v1201, %v1200
          %v1231 = vpack.c.bf16 %v1203, %v1202
          %v1232 = vpack.c.bf16 %v1205, %v1204
          %v1233 = vpack.c.bf16 %v1207, %v1206
          %v1234 = vpack.c.bf16 %v1209, %v1208
          %v1235 = vpack.c.bf16 %v1211, %v1210
          %v1236 = vpack.c.bf16 %v1213, %v1212
          %v1237 = vpack.c.bf16 %v1215, %v1214
          %v1238 = vpack.c.bf16 %v1217, %v1216
          %v1239 = vpack.c.bf16 %v1219, %v1218
          %v1240 = vpack.c.bf16 %v1221, %v1220
          %v1241 = vpack.c.bf16 %v1223, %v1222
          %v1242 = vpack.c.bf16 %v1225, %v1224
          %v1243 = vpack.c.bf16 %v1227, %v1226
          %v1244 = vld [vmem:[%s4] sm:$0xf]
          %v1245 = vld [vmem:[%s4 + $0x4] sm:$0xf]
          %v1246 = vld [vmem:[%s4 + $0x8] sm:$0xf]
          %v1247 = vld [vmem:[%s4 + $0xc] sm:$0xf]
          %v1252 = vunpack.c.l.b16 %v1244
          %v1253 = vunpack.c.l.b16 %v1245
          %v1254 = vunpack.c.l.b16 %v1246
          %v1255 = vunpack.c.l.b16 %v1247
          %v1256 = vpack.c.b16 %v1253, %v1252
          %v1257 = vpack.c.b16 %v1255, %v1254
          %v1261 = vsel %vm1088, %v1228, 0
          %v1264 = vsel %vm1088, %v1229, 0
          %v1267 = vsel %vm1088, %v1230, 0
          %v1270 = vsel %vm1088, %v1231, 0
          %v1273 = vsel %vm1088, %v1232, 0
          %v1276 = vsel %vm1088, %v1233, 0
          %v1279 = vsel %vm1088, %v1234, 0
          %v1282 = vsel %vm1088, %v1235, 0
          %v1285 = vsel %vm1088, %v1236, 0
          %v1288 = vsel %vm1088, %v1237, 0
          %v1291 = vsel %vm1088, %v1238, 0
          %v1294 = vsel %vm1088, %v1239, 0
          %v1297 = vsel %vm1088, %v1240, 0
          %v1300 = vsel %vm1088, %v1241, 0
          %v1303 = vsel %vm1088, %v1242, 0
          %v1306 = vsel %vm1088, %v1243, 0
          %1308 = vmatprep.subr.bf16.mxu0 0
          %1309 = vmatpush1.bf16.msra.mxu0 %v1256
          %1310 = vmatprep.subr.bf16.mxu0 0
          %1311 = vmatpush1.bf16.msra.mxu0 %v1257
          %1312 = vmatprep.subr.bf16.mxu0 0
          %1313 = vmatpush1.bf16.msra.mxu0 0
          %1314 = vmatprep.subr.bf16.mxu0 0
          %1315 = vmatpush1.bf16.msra.mxu0 0
          %1316 = vmatprep.subr.bf16.mxu0 0
          %1317 = vmatpush1.bf16.msra.mxu0 0
          %1318 = vmatprep.subr.bf16.mxu0 0
          %1319 = vmatpush1.bf16.msra.mxu0 0
          %1320 = vmatprep.subr.bf16.mxu0 0
          %1321 = vmatpush1.bf16.msra.mxu0 0
          %1322 = vmatprep.subr.bf16.mxu0 0
          %1323 = vmatpush1.bf16.msra.mxu0 0
          %1324 = vmatprep.subr.bf16.mxu0 0
          %1325 = vmatpush1.bf16.msra.mxu0 0
          %1326 = vmatprep.subr.bf16.mxu0 0
          %1327 = vmatpush1.bf16.msra.mxu0 0
          %1328 = vmatprep.subr.bf16.mxu0 0
          %1329 = vmatpush1.bf16.msra.mxu0 0
          %1330 = vmatprep.subr.bf16.mxu0 0
          %1331 = vmatpush1.bf16.msra.mxu0 0
          %1332 = vmatprep.subr.bf16.mxu0 0
          %1333 = vmatpush1.bf16.msra.mxu0 0
          %1334 = vmatprep.subr.bf16.mxu0 0
          %1335 = vmatpush1.bf16.msra.mxu0 0
          %1336 = vmatprep.subr.bf16.mxu0 0
          %1337 = vmatpush1.bf16.msra.mxu0 0
          %1338 = vmatprep.subr.bf16.mxu0 0
          %1339 = vmatpush1.bf16.msra.mxu0 0
          %1340 = vmatprep.mubr.bf16.mxu0 0
          %1341 = vmatmul.mubr.bf16.gmra.mrb[0].mxu0 %v1261
          %v1342 = vpop.f32.mrb[0].mxu0
          %v1343 = vadd.f32 0.0, %v1342
          %v1344 = vpop.f32.mrb[0].mxu0
          %v1345 = vpop.f32.mrb[0].mxu0
          %v1346 = vadd.f32 0.0, %v1345
          %v1347 = vpop.f32.mrb[0].mxu0
          %1348 = vmatprep.mubr.bf16.mxu0 0
          %1349 = vmatmul.mubr.bf16.gmra.mrb[0].mxu0 %v1264
          %v1350 = vpop.f32.mrb[0].mxu0
          %v1351 = vadd.f32 0.0, %v1350
          %v1352 = vpop.f32.mrb[0].mxu0
          %v1353 = vpop.f32.mrb[0].mxu0
          %v1354 = vadd.f32 0.0, %v1353
          %v1355 = vpop.f32.mrb[0].mxu0
          %1356 = vmatprep.mubr.bf16.mxu0 0
          %1357 = vmatmul.mubr.bf16.gmra.mrb[0].mxu0 %v1267
          %v1358 = vpop.f32.mrb[0].mxu0
          %v1359 = vadd.f32 0.0, %v1358
          %v1360 = vpop.f32.mrb[0].mxu0
          %v1361 = vpop.f32.mrb[0].mxu0
          %v1362 = vadd.f32 0.0, %v1361
          %v1363 = vpop.f32.mrb[0].mxu0
          %1364 = vmatprep.mubr.bf16.mxu0 0
          %1365 = vmatmul.mubr.bf16.gmra.mrb[0].mxu0 %v1270
          %v1366 = vpop.f32.mrb[0].mxu0
          %v1367 = vadd.f32 0.0, %v1366
          %v1368 = vpop.f32.mrb[0].mxu0
          %v1369 = vpop.f32.mrb[0].mxu0
          %v1370 = vadd.f32 0.0, %v1369
          %v1371 = vpop.f32.mrb[0].mxu0
          %1372 = vmatprep.mubr.bf16.mxu0 0
          %1373 = vmatmul.mubr.bf16.gmra.mrb[0].mxu0 %v1273
          %v1374 = vpop.f32.mrb[0].mxu0
          %v1375 = vadd.f32 0.0, %v1374
          %v1376 = vpop.f32.mrb[0].mxu0
          %v1377 = vpop.f32.mrb[0].mxu0
          %v1378 = vadd.f32 0.0, %v1377
          %v1379 = vpop.f32.mrb[0].mxu0
          %1380 = vmatprep.mubr.bf16.mxu0 0
          %1381 = vmatmul.mubr.bf16.gmra.mrb[0].mxu0 %v1276
          %v1382 = vpop.f32.mrb[0].mxu0
          %v1383 = vadd.f32 0.0, %v1382
          %v1384 = vpop.f32.mrb[0].mxu0
          %v1385 = vpop.f32.mrb[0].mxu0
          %v1386 = vadd.f32 0.0, %v1385
          %v1387 = vpop.f32.mrb[0].mxu0
          %1388 = vmatprep.mubr.bf16.mxu0 0
          %1389 = vmatmul.mubr.bf16.gmra.mrb[0].mxu0 %v1279
          %v1390 = vpop.f32.mrb[0].mxu0
          %v1391 = vadd.f32 0.0, %v1390
          %v1392 = vpop.f32.mrb[0].mxu0
          %v1393 = vpop.f32.mrb[0].mxu0
          %v1394 = vadd.f32 0.0, %v1393
          %v1395 = vpop.f32.mrb[0].mxu0
          %1396 = vmatprep.mubr.bf16.mxu0 0
          %1397 = vmatmul.mubr.bf16.gmra.mrb[0].mxu0 %v1282
          %v1398 = vpop.f32.mrb[0].mxu0
          %v1399 = vadd.f32 0.0, %v1398
          %v1400 = vpop.f32.mrb[0].mxu0
          %v1401 = vpop.f32.mrb[0].mxu0
          %v1402 = vadd.f32 0.0, %v1401
          %v1403 = vpop.f32.mrb[0].mxu0
          %1404 = vmatprep.mubr.bf16.mxu0 0
          %1405 = vmatmul.mubr.bf16.gmra.mrb[0].mxu0 %v1285
          %v1406 = vpop.f32.mrb[0].mxu0
          %v1407 = vadd.f32 0.0, %v1406
          %v1408 = vpop.f32.mrb[0].mxu0
          %v1409 = vpop.f32.mrb[0].mxu0
          %v1410 = vadd.f32 0.0, %v1409
          %v1411 = vpop.f32.mrb[0].mxu0
          %1412 = vmatprep.mubr.bf16.mxu0 0
          %1413 = vmatmul.mubr.bf16.gmra.mrb[0].mxu0 %v1288
          %v1414 = vpop.f32.mrb[0].mxu0
          %v1415 = vadd.f32 0.0, %v1414
          %v1416 = vpop.f32.mrb[0].mxu0
          %v1417 = vpop.f32.mrb[0].mxu0
          %v1418 = vadd.f32 0.0, %v1417
          %v1419 = vpop.f32.mrb[0].mxu0
          %1420 = vmatprep.mubr.bf16.mxu0 0
          %1421 = vmatmul.mubr.bf16.gmra.mrb[0].mxu0 %v1291
          %v1422 = vpop.f32.mrb[0].mxu0
          %v1423 = vadd.f32 0.0, %v1422
          %v1424 = vpop.f32.mrb[0].mxu0
          %v1425 = vpop.f32.mrb[0].mxu0
          %v1426 = vadd.f32 0.0, %v1425
          %v1427 = vpop.f32.mrb[0].mxu0
          %1428 = vmatprep.mubr.bf16.mxu0 0
          %1429 = vmatmul.mubr.bf16.gmra.mrb[0].mxu0 %v1294
          %v1430 = vpop.f32.mrb[0].mxu0
          %v1431 = vadd.f32 0.0, %v1430
          %v1432 = vpop.f32.mrb[0].mxu0
          %v1433 = vpop.f32.mrb[0].mxu0
          %v1434 = vadd.f32 0.0, %v1433
          %v1435 = vpop.f32.mrb[0].mxu0
          %1436 = vmatprep.mubr.bf16.mxu0 0
          %1437 = vmatmul.mubr.bf16.gmra.mrb[0].mxu0 %v1297
          %v1438 = vpop.f32.mrb[0].mxu0
          %v1439 = vadd.f32 0.0, %v1438
          %v1440 = vpop.f32.mrb[0].mxu0
          %v1441 = vpop.f32.mrb[0].mxu0
          %v1442 = vadd.f32 0.0, %v1441
          %v1443 = vpop.f32.mrb[0].mxu0
          %1444 = vmatprep.mubr.bf16.mxu0 0
          %1445 = vmatmul.mubr.bf16.gmra.mrb[0].mxu0 %v1300
          %v1446 = vpop.f32.mrb[0].mxu0
          %v1447 = vadd.f32 0.0, %v1446
          %v1448 = vpop.f32.mrb[0].mxu0
          %v1449 = vpop.f32.mrb[0].mxu0
          %v1450 = vadd.f32 0.0, %v1449
          %v1451 = vpop.f32.mrb[0].mxu0
          %1452 = vmatprep.mubr.bf16.mxu0 0
          %1453 = vmatmul.mubr.bf16.gmra.mrb[0].mxu0 %v1303
          %v1454 = vpop.f32.mrb[0].mxu0
          %v1455 = vadd.f32 0.0, %v1454
          %v1456 = vpop.f32.mrb[0].mxu0
          %v1457 = vpop.f32.mrb[0].mxu0
          %v1458 = vadd.f32 0.0, %v1457
          %v1459 = vpop.f32.mrb[0].mxu0
          %1460 = vmatprep.mubr.bf16.mxu0 0
          %1461 = vmatmul.mubr.bf16.gmra.mrb[0].mxu0 %v1306
          %v1462 = vpop.f32.mrb[0].mxu0
          %v1463 = vadd.f32 0.0, %v1462
          %v1464 = vpop.f32.mrb[0].mxu0
          %v1465 = vpop.f32.mrb[0].mxu0
          %v1466 = vadd.f32 0.0, %v1465
          %v1467 = vpop.f32.mrb[0].mxu0
          %1468 = vdwg.mxu0
          %v1469 = vpack.c.bf16 %v1346, %v1343
          %v1470 = vpack.c.bf16 %v1354, %v1351
          %v1471 = vpack.c.bf16 %v1362, %v1359
          %v1472 = vpack.c.bf16 %v1370, %v1367
          %v1473 = vpack.c.bf16 %v1378, %v1375
          %v1474 = vpack.c.bf16 %v1386, %v1383
          %v1475 = vpack.c.bf16 %v1394, %v1391
          %v1476 = vpack.c.bf16 %v1402, %v1399
          %v1477 = vpack.c.bf16 %v1410, %v1407
          %v1478 = vpack.c.bf16 %v1418, %v1415
          %v1479 = vpack.c.bf16 %v1426, %v1423
          %v1480 = vpack.c.bf16 %v1434, %v1431
          %v1481 = vpack.c.bf16 %v1442, %v1439
          %v1482 = vpack.c.bf16 %v1450, %v1447
          %v1483 = vpack.c.bf16 %v1458, %v1455
          %v1484 = vpack.c.bf16 %v1466, %v1463
          %v1501 = vunpack.c.l.b16 %v1469
          %v1502 = vunpack.c.h.b16 %v1469
          %v1503 = vunpack.c.l.b16 %v1470
          %v1504 = vunpack.c.h.b16 %v1470
          %v1505 = vunpack.c.l.b16 %v1471
          %v1506 = vunpack.c.h.b16 %v1471
          %v1507 = vunpack.c.l.b16 %v1472
          %v1508 = vunpack.c.h.b16 %v1472
          %v1509 = vunpack.c.l.b16 %v1473
          %v1510 = vunpack.c.h.b16 %v1473
          %v1511 = vunpack.c.l.b16 %v1474
          %v1512 = vunpack.c.h.b16 %v1474
          %v1513 = vunpack.c.l.b16 %v1475
          %v1514 = vunpack.c.h.b16 %v1475
          %v1515 = vunpack.c.l.b16 %v1476
          %v1516 = vunpack.c.h.b16 %v1476
          %v1517 = vunpack.c.l.b16 %v1477
          %v1518 = vunpack.c.h.b16 %v1477
          %v1519 = vunpack.c.l.b16 %v1478
          %v1520 = vunpack.c.h.b16 %v1478
          %v1521 = vunpack.c.l.b16 %v1479
          %v1522 = vunpack.c.h.b16 %v1479
          %v1523 = vunpack.c.l.b16 %v1480
          %v1524 = vunpack.c.h.b16 %v1480
          %v1525 = vunpack.c.l.b16 %v1481
          %v1526 = vunpack.c.h.b16 %v1481
          %v1527 = vunpack.c.l.b16 %v1482
          %v1528 = vunpack.c.h.b16 %v1482
          %v1529 = vunpack.c.l.b16 %v1483
          %v1530 = vunpack.c.h.b16 %v1483
          %v1531 = vunpack.c.l.b16 %v1484
          %v1532 = vunpack.c.h.b16 %v1484
          %v1533 = vpack.c.b16 %v1501, %v1501
          %v1534 = vpack.c.b16 %v1502, %v1502
          %v1535 = vpack.c.b16 %v1503, %v1503
          %v1536 = vpack.c.b16 %v1504, %v1504
          %v1537 = vpack.c.b16 %v1505, %v1505
          %v1538 = vpack.c.b16 %v1506, %v1506
          %v1539 = vpack.c.b16 %v1507, %v1507
          %v1540 = vpack.c.b16 %v1508, %v1508
          %v1541 = vpack.c.b16 %v1509, %v1509
          %v1542 = vpack.c.b16 %v1510, %v1510
          %v1543 = vpack.c.b16 %v1511, %v1511
          %v1544 = vpack.c.b16 %v1512, %v1512
          %v1545 = vpack.c.b16 %v1513, %v1513
          %v1546 = vpack.c.b16 %v1514, %v1514
          %v1547 = vpack.c.b16 %v1515, %v1515
          %v1548 = vpack.c.b16 %v1516, %v1516
          %v1549 = vpack.c.b16 %v1517, %v1517
          %v1550 = vpack.c.b16 %v1518, %v1518
          %v1551 = vpack.c.b16 %v1519, %v1519
          %v1552 = vpack.c.b16 %v1520, %v1520
          %v1553 = vpack.c.b16 %v1521, %v1521
          %v1554 = vpack.c.b16 %v1522, %v1522
          %v1555 = vpack.c.b16 %v1523, %v1523
          %v1556 = vpack.c.b16 %v1524, %v1524
          %v1557 = vpack.c.b16 %v1525, %v1525
          %v1558 = vpack.c.b16 %v1526, %v1526
          %v1559 = vpack.c.b16 %v1527, %v1527
          %v1560 = vpack.c.b16 %v1528, %v1528
          %v1561 = vpack.c.b16 %v1529, %v1529
          %v1562 = vpack.c.b16 %v1530, %v1530
          %v1563 = vpack.c.b16 %v1531, %v1531
          %v1564 = vpack.c.b16 %v1532, %v1532
          %vm1597 = vcmask 27648
          %1598 = vst.msk [vmem:[%s285] sm:$0xf] %vm1597, %v1533
          %1599 = vst.msk [vmem:[%s285 + $0x4] sm:$0xf] %vm1597, %v1534
          %1600 = vst.msk [vmem:[%s285 + $0x8] sm:$0xf] %vm1597, %v1535
          %1601 = vst.msk [vmem:[%s285 + $0xc] sm:$0xf] %vm1597, %v1536
          %1602 = vst.msk [vmem:[%s285 + $0x10] sm:$0xf] %vm1597, %v1537
          %1603 = vst.msk [vmem:[%s285 + $0x14] sm:$0xf] %vm1597, %v1538
          %1604 = vst.msk [vmem:[%s285 + $0x18] sm:$0xf] %vm1597, %v1539
          %1605 = vst.msk [vmem:[%s285 + $0x1c] sm:$0xf] %vm1597, %v1540
          %1606 = vst.msk [vmem:[%s285 + $0x20] sm:$0xf] %vm1597, %v1541
          %1607 = vst.msk [vmem:[%s285 + $0x24] sm:$0xf] %vm1597, %v1542
          %1608 = vst.msk [vmem:[%s285 + $0x28] sm:$0xf] %vm1597, %v1543
          %1609 = vst.msk [vmem:[%s285 + $0x2c] sm:$0xf] %vm1597, %v1544
          %1610 = vst.msk [vmem:[%s285 + $0x30] sm:$0xf] %vm1597, %v1545
          %1611 = vst.msk [vmem:[%s285 + $0x34] sm:$0xf] %vm1597, %v1546
          %1612 = vst.msk [vmem:[%s285 + $0x38] sm:$0xf] %vm1597, %v1547
          %1613 = vst.msk [vmem:[%s285 + $0x3c] sm:$0xf] %vm1597, %v1548
          %1614 = vst.msk [vmem:[%s285 + $0x40] sm:$0xf] %vm1597, %v1549
          %1615 = vst.msk [vmem:[%s285 + $0x44] sm:$0xf] %vm1597, %v1550
          %1616 = vst.msk [vmem:[%s285 + $0x48] sm:$0xf] %vm1597, %v1551
          %1617 = vst.msk [vmem:[%s285 + $0x4c] sm:$0xf] %vm1597, %v1552
          %1618 = vst.msk [vmem:[%s285 + $0x50] sm:$0xf] %vm1597, %v1553
          %1619 = vst.msk [vmem:[%s285 + $0x54] sm:$0xf] %vm1597, %v1554
          %1620 = vst.msk [vmem:[%s285 + $0x58] sm:$0xf] %vm1597, %v1555
          %1621 = vst.msk [vmem:[%s285 + $0x5c] sm:$0xf] %vm1597, %v1556
          %1622 = vst.msk [vmem:[%s285 + $0x60] sm:$0xf] %vm1597, %v1557
          %1623 = vst.msk [vmem:[%s285 + $0x64] sm:$0xf] %vm1597, %v1558
          %1624 = vst.msk [vmem:[%s285 + $0x68] sm:$0xf] %vm1597, %v1559
          %1625 = vst.msk [vmem:[%s285 + $0x6c] sm:$0xf] %vm1597, %v1560
          %1626 = vst.msk [vmem:[%s285 + $0x70] sm:$0xf] %vm1597, %v1561
          %1627 = vst.msk [vmem:[%s285 + $0x74] sm:$0xf] %vm1597, %v1562
          %1628 = vst.msk [vmem:[%s285 + $0x78] sm:$0xf] %vm1597, %v1563
          %1629 = vst.msk [vmem:[%s285 + $0x7c] sm:$0xf] %vm1597, %v1564
        $region52: #{tpu_custom_call.1} parent=39 // pred_fallthru
          _
        %s1630 = smul.u32 32, %s23
        %p1631 = scmp.lt.s32.totalorder %s1630, 63
        %s1632 = scalar_select %p1631, %s1630, 63
        %s1633 = smul.addr %s1632, 4
        %s1634 = scalar_lea.vmem %s5, %s1633
        // Predicated region
        $region53: #{tpu_custom_call.1} parent=39 // pred_check
          %p1635 = pneg %p166
        $region54: #{tpu_custom_call.1} parent=39 // pred_check_branch
          %1637 = sbr.rel (%p1635) target = $region56
        $region55: #{tpu_custom_call.1} parent=39 // pred_region
          %s1638 = smul.u32 32, %s23
        $region56: #{tpu_custom_call.1} parent=39 // pred_fallthru
          _
      $region40: #{tpu_custom_call.1} parent=5 // pred_fallthru
        _
      %p1639 = scmp.le.s32.totalorder 2, %s14
      // Predicated region
      $region57: #{tpu_custom_call.1} parent=5 // pred_check
        %p1640 = pneg %p1639
      $region58: #{tpu_custom_call.1} parent=5 // pred_check_branch
        %1642 = sbr.rel (%p1640) target = $region60
      $region59: #{tpu_custom_call.1} parent=5 // pred_region
        %s1643 = ssub.s32 %s14, 2
        // Predicated region
        $region61: #{tpu_custom_call.1} parent=59 // pred_check
          %p1644 = pneg %p172
        $region62: #{tpu_custom_call.1} parent=59 // pred_check_branch
          %1646 = sbr.rel (%p1644) target = $region64
        $region63: #{tpu_custom_call.1} parent=59 // pred_region
          %s1647 = smul.u32 32, %s25
          %p1648 = scmp.lt.s32.totalorder %s1647, 63
          %s1649 = scalar_select %p1648, %s1647, 63
          %s1650 = smul.addr %s1649, 4
          %s1651 = scalar_lea.vmem %s5, %s1650
        $region64: #{tpu_custom_call.1} parent=59 // pred_fallthru
          _
      $region60: #{tpu_custom_call.1} parent=5 // pred_fallthru
        _
    $region6: #{tpu_custom_call.1} parent=1 // loop_footer
      %s18 = sadd.s32 1, %s14
    $region7: #{tpu_custom_call.1} parent=1 // loop_footer_branch
      %13 = sbr.rel target = $region3
    $region8: #{tpu_custom_call.1} parent=1 // loop_exit
      _
    %1652 = vsyncpa [#allocation4], 1
    %s1653 = scalar_lea.sflag [#allocation4], 1
    %1654 = vsyncpa %s1653, 1

</llo_original>
